<compile_context>
chip_gen: v5e
topology: v5e:2x2
jax: 0.10.0
libtpu: 0.0.40
codegen_flags: <defaults>
</compile_context>

<pallas_src>
import jax
import jax.numpy as jnp
from jax.experimental import pallas as pl
from jax.experimental.pallas import tpu as pltpu

KH = KW = 3          # kernel_size=3
PAD = 1              # padding=1, stride=1 -> "same" spatial output
EPS = 1e-5
NEG_SLOPE = 0.1
LANE = 128


def _round_up(x, m):
    return (x + m - 1) // m * m


# ---------------------------------------------------------------------------
# Phase 1: conv (im2col, single MXU matmul per image) + partial BN statistics
# ---------------------------------------------------------------------------
def conv_stats_kernel(x_ref, w_ref, conv_ref, sum_ref, ssq_ref):
    # x_ref:    (1, H+2, W+2, Cin)  spatially pre-padded bf16 image (one grid step)
    # w_ref:    (KH*KW*Cin, Coutp)  bf16 weight, im2col layout, Cout padded to 128
    # conv_ref: (1, H, W, Coutp)    f32 pre-BN conv output
    # sum_ref:  (1, 1, Coutp)       f32 per-image channel sum
    # ssq_ref:  (1, 1, Coutp)       f32 per-image channel sum of squares
    _, Hp, Wp, Cin = x_ref.shape
    H = Hp - 2 * PAD
    W = Wp - 2 * PAD
    Coutp = w_ref.shape[-1]

    xp = x_ref[0]                                     # (Hp, Wp, Cin)

    # Build the im2col slab once per tile (9 window relayouts feeding ONE
    # well-shaped matmul, instead of 9 tiny K=Cin matmuls).
    cols = []
    for dy in range(KH):                              # static 3x3 tap loop
        for dx in range(KW):
            win = xp[dy:dy + H, dx:dx + W, :]         # (H, W, Cin)
            cols.append(win.reshape(H * W, Cin))
    slab = jnp.concatenate(cols, axis=-1)             # (H*W, KH*KW*Cin)

    # bf16 x bf16 -> f32 accumulate on the MXU; lane-dense (Coutp=128k) output.
    acc = jnp.dot(slab, w_ref[...], preferred_element_type=jnp.float32)

    conv_ref[...] = acc.reshape(1, H, W, Coutp)

    # Partial batch-norm statistics for this image (combined in the wrapper).
    sum_ref[...] = jnp.sum(acc, axis=0, keepdims=True).reshape(1, 1, Coutp)
    ssq_ref[...] = jnp.sum(acc * acc, axis=0, keepdims=True).reshape(1, 1, Coutp)


# ---------------------------------------------------------------------------
# Phase 2: y = conv * scale + bias  (folded BN affine), then LeakyReLU(0.1)
# ---------------------------------------------------------------------------
def bn_act_kernel(conv_ref, scale_ref, bias_ref, o_ref):
    Coutp = scale_ref.shape[-1]
    scale = scale_ref[...].reshape(1, 1, 1, Coutp)     # lane-padded (1,128) params
    bias = bias_ref[...].reshape(1, 1, 1, Coutp)
    y = conv_ref[...] * scale + bias                   # f32 elementwise (v5e-safe)
    o_ref[...] = jnp.where(y > 0, y, NEG_SLOPE * y).astype(o_ref.dtype)


# ---------------------------------------------------------------------------
# Wrapper: PyTorch-facing (NCHW in / NCHW out)
# ---------------------------------------------------------------------------
def cnn_block(x_nchw, weight_oihw, gamma, beta, *, compute_dtype=jnp.bfloat16):
    N, Cin, H, W = x_nchw.shape
    Cout = weight_oihw.shape[0]
    Coutp = max(LANE, _round_up(Cout, LANE))           # lane-dense channel padding
    K = KH * KW * Cin
    Hp, Wp = H + 2 * PAD, W + 2 * PAD

    # Layout glue: NCHW -> NHWC, bf16 MXU inputs, spatial zero-pad,
    # weight -> (KH*KW*Cin, Coutp) im2col layout (Cout zero-padded).
    x_nhwc = jnp.transpose(x_nchw, (0, 2, 3, 1)).astype(compute_dtype)
    x_pad = jnp.pad(x_nhwc, ((0, 0), (PAD, PAD), (PAD, PAD), (0, 0)))

    w = jnp.transpose(weight_oihw, (2, 3, 1, 0)).reshape(K, Cout)
    w = jnp.pad(w, ((0, 0), (0, Coutp - Cout))).astype(compute_dtype)

    # --- phase 1: conv + per-image partial stats, grid over batch (parallel) ---
    conv, psum, pssq = pl.pallas_call(
        conv_stats_kernel,
        out_shape=(
            jax.ShapeDtypeStruct((N, H, W, Coutp), jnp.float32),
            jax.ShapeDtypeStruct((N, 1, Coutp), jnp.float32),
            jax.ShapeDtypeStruct((N, 1, Coutp), jnp.float32),
        ),
        grid=(N,),
        in_specs=[
            pl.BlockSpec((1, Hp, Wp, Cin), lambda n: (n, 0, 0, 0)),
            pl.BlockSpec((K, Coutp), lambda n: (0, 0)),
        ],
        out_specs=(
            pl.BlockSpec((1, H, W, Coutp), lambda n: (n, 0, 0, 0)),
            pl.BlockSpec((1, 1, Coutp), lambda n: (n, 0, 0)),
            pl.BlockSpec((1, 1, Coutp), lambda n: (n, 0, 0)),
        ),
        compiler_params=pltpu.CompilerParams(
            dimension_semantics=("parallel",)),
    )(x_pad, w)

    # --- fold BN into a single per-channel affine (training-mode batch stats,
    #     biased variance).  Tiny per-channel math; f32 partial sums keep the
    #     E[x^2]-E[x]^2 form within BN tolerance. ---
    cnt = float(N * H * W)
    mean = jnp.sum(psum[:, 0, :], axis=0) / cnt                   # (Coutp,)
    ex2 = jnp.sum(pssq[:, 0, :], axis=0) / cnt
    var = jnp.maximum(ex2 - mean * mean, 0.0)
    inv_std = jax.lax.rsqrt(var + EPS)
    g = jnp.pad(gamma.astype(jnp.float32), (0, Coutp - Cout))
    b = jnp.pad(beta.astype(jnp.float32), (0, Coutp - Cout))
    scale = (g * inv_std).reshape(1, Coutp)
    bias = (b - mean * g * inv_std).reshape(1, Coutp)

    # --- phase 2: normalize + LeakyReLU, lane-dense output, grid over batch ---
    out_nhwc = pl.pallas_call(
        bn_act_kernel,
        out_shape=jax.ShapeDtypeStruct((N, H, W, Coutp), jnp.float32),
        grid=(N,),
        in_specs=[
            pl.BlockSpec((1, H, W, Coutp), lambda n: (n, 0, 0, 0)),
            pl.BlockSpec((1, Coutp), lambda n: (0, 0)),
            pl.BlockSpec((1, Coutp), lambda n: (0, 0)),
        ],
        out_specs=pl.BlockSpec((1, H, W, Coutp), lambda n: (n, 0, 0, 0)),
        compiler_params=pltpu.CompilerParams(
            dimension_semantics=("parallel",)),
    )(conv, scale, bias)

    # Strip the lane padding and return in the PyTorch NCHW convention.
    return jnp.transpose(out_nhwc[..., :Cout], (0, 3, 1, 2))


def _reference(x_nchw, weight_oihw, gamma, beta, compute_dtype=jnp.bfloat16):
    """Pure-JAX reference with matching bf16-input / f32-accumulate conv."""
    conv = jax.lax.conv_general_dilated(
        x_nchw.astype(compute_dtype), weight_oihw.astype(compute_dtype),
        window_strides=(1, 1), padding=[(PAD, PAD), (PAD, PAD)],
        dimension_numbers=("NCHW", "OIHW", "NCHW"),
        preferred_element_type=jnp.float32)
    mean = jnp.mean(conv, axis=(0, 2, 3), keepdims=True)
    var = jnp.mean((conv - mean) ** 2, axis=(0, 2, 3), keepdims=True)
    y = (conv - mean) * jax.lax.rsqrt(var + EPS)
    y = y * gamma.reshape(1, -1, 1, 1) + beta.reshape(1, -1, 1, 1)
    return jnp.where(y > 0, y, NEG_SLOPE * y)


if __name__ == "__main__":
    N, Cin, H, W = 2, 4, 16, 16
    Cout = 8

    key = jax.random.PRNGKey(0)
    kx, kw, kg, kb = jax.random.split(key, 4)
    x = jax.random.normal(kx, (N, Cin, H, W), dtype=jnp.float32)
    weight = jax.random.normal(kw, (Cout, Cin, KH, KW), dtype=jnp.float32) * 0.1
    gamma = 1.0 + 0.1 * jax.random.normal(kg, (Cout,), dtype=jnp.float32)
    beta = 0.1 * jax.random.normal(kb, (Cout,), dtype=jnp.float32)

    out = jax.block_until_ready(cnn_block(x, weight, gamma, beta))
    ref = jax.block_until_ready(_reference(x, weight, gamma, beta))

    assert out.shape == (N, Cout, H, W)
    assert jnp.max(jnp.abs(out - ref)) < 5e-4

    print("KERNEL_OK")
</pallas_src>

<mosaic_0001>
module attributes {stable_mosaic.version = 11 : i64} {
  func.func @conv_stats_kernel(%arg0: i32, %arg1: memref<1x18x18x4xbf16, #tpu.memory_space<vmem>>, %arg2: memref<36x128xbf16, #tpu.memory_space<vmem>>, %arg3: memref<1x16x16x128xf32, #tpu.memory_space<vmem>>, %arg4: memref<1x1x128xf32, #tpu.memory_space<vmem>>, %arg5: memref<1x1x128xf32, #tpu.memory_space<vmem>>) attributes {dimension_semantics = [#tpu.dimension_semantics<parallel>], iteration_bounds = array<i64: 2>, scalar_prefetch = 0 : i64, scratch_operands = 0 : i64, tpu.core_type = #tpu.core_type<tc>, window_params = [{transform_indices = @transform_0, window_bounds = array<i64: 1, 18, 18, 4>}, {pipeline_mode = #tpu.pipeline_mode<synchronous>, transform_indices = @transform_1, window_bounds = array<i64: 36, 128>}, {transform_indices = @transform_2, window_bounds = array<i64: 1, 16, 16, 128>}, {transform_indices = @transform_3, window_bounds = array<i64: 1, 1, 128>}, {transform_indices = @transform_4, window_bounds = array<i64: 1, 1, 128>}]} {
    %c0 = arith.constant 0 : index
    %c0_0 = arith.constant 0 : index
    %c0_1 = arith.constant 0 : index
    %c0_2 = arith.constant 0 : index
    %0 = vector.load %arg1[%c0, %c0_0, %c0_1, %c0_2] : memref<1x18x18x4xbf16, #tpu.memory_space<vmem>>, vector<1x18x18x4xbf16>
    %1 = vector.shape_cast %0 : vector<1x18x18x4xbf16> to vector<18x18x4xbf16>
    %2 = vector.extract_strided_slice %1 {offsets = [0, 0, 0], sizes = [16, 16, 4], strides = [1, 1, 1]} : vector<18x18x4xbf16> to vector<16x16x4xbf16>
    %3 = vector.shape_cast %2 : vector<16x16x4xbf16> to vector<256x4xbf16>
    %4 = vector.extract_strided_slice %1 {offsets = [0, 1, 0], sizes = [16, 16, 4], strides = [1, 1, 1]} : vector<18x18x4xbf16> to vector<16x16x4xbf16>
    %5 = vector.shape_cast %4 : vector<16x16x4xbf16> to vector<256x4xbf16>
    %6 = vector.extract_strided_slice %1 {offsets = [0, 2, 0], sizes = [16, 16, 4], strides = [1, 1, 1]} : vector<18x18x4xbf16> to vector<16x16x4xbf16>
    %7 = vector.shape_cast %6 : vector<16x16x4xbf16> to vector<256x4xbf16>
    %8 = vector.extract_strided_slice %1 {offsets = [1, 0, 0], sizes = [16, 16, 4], strides = [1, 1, 1]} : vector<18x18x4xbf16> to vector<16x16x4xbf16>
    %9 = vector.shape_cast %8 : vector<16x16x4xbf16> to vector<256x4xbf16>
    %10 = vector.extract_strided_slice %1 {offsets = [1, 1, 0], sizes = [16, 16, 4], strides = [1, 1, 1]} : vector<18x18x4xbf16> to vector<16x16x4xbf16>
    %11 = vector.shape_cast %10 : vector<16x16x4xbf16> to vector<256x4xbf16>
    %12 = vector.extract_strided_slice %1 {offsets = [1, 2, 0], sizes = [16, 16, 4], strides = [1, 1, 1]} : vector<18x18x4xbf16> to vector<16x16x4xbf16>
    %13 = vector.shape_cast %12 : vector<16x16x4xbf16> to vector<256x4xbf16>
    %14 = vector.extract_strided_slice %1 {offsets = [2, 0, 0], sizes = [16, 16, 4], strides = [1, 1, 1]} : vector<18x18x4xbf16> to vector<16x16x4xbf16>
    %15 = vector.shape_cast %14 : vector<16x16x4xbf16> to vector<256x4xbf16>
    %16 = vector.extract_strided_slice %1 {offsets = [2, 1, 0], sizes = [16, 16, 4], strides = [1, 1, 1]} : vector<18x18x4xbf16> to vector<16x16x4xbf16>
    %17 = vector.shape_cast %16 : vector<16x16x4xbf16> to vector<256x4xbf16>
    %18 = vector.extract_strided_slice %1 {offsets = [2, 2, 0], sizes = [16, 16, 4], strides = [1, 1, 1]} : vector<18x18x4xbf16> to vector<16x16x4xbf16>
    %19 = vector.shape_cast %18 : vector<16x16x4xbf16> to vector<256x4xbf16>
    %20 = tpu.concatenate %3, %5, %7, %9, %11, %13, %15, %17, %19 in 1 : vector<256x4xbf16>, vector<256x4xbf16>, vector<256x4xbf16>, vector<256x4xbf16>, vector<256x4xbf16>, vector<256x4xbf16>, vector<256x4xbf16>, vector<256x4xbf16>, vector<256x4xbf16> -> vector<256x36xbf16>
    %c0_3 = arith.constant 0 : index
    %c0_4 = arith.constant 0 : index
    %21 = vector.load %arg2[%c0_3, %c0_4] : memref<36x128xbf16, #tpu.memory_space<vmem>>, vector<36x128xbf16>
    %cst = arith.constant dense<0.000000e+00> : vector<256x128xf32>
    %22 = tpu.matmul %20, %21, %cst {dimension_numbers = #tpu.dot_dimension_numbers<[1], [0], [0], [1], [0, 0, 1, 1], [], []>} : vector<256x36xbf16>, vector<36x128xbf16>, vector<256x128xf32> -> vector<256x128xf32>
    %23 = vector.shape_cast %22 : vector<256x128xf32> to vector<1x16x16x128xf32>
    %c0_5 = arith.constant 0 : index
    %c0_6 = arith.constant 0 : index
    %c0_7 = arith.constant 0 : index
    %c0_8 = arith.constant 0 : index
    %24 = vector.load %arg3[%c0_5, %c0_6, %c0_7, %c0_8] : memref<1x16x16x128xf32, #tpu.memory_space<vmem>>, vector<1x16x16x128xf32>
    tpu.vector_store %arg3[%c0_5, %c0_6, %c0_7, %c0_8], %23 {strides = array<i32>} : memref<1x16x16x128xf32, #tpu.memory_space<vmem>>, vector<1x16x16x128xf32>,
    %cst_9 = arith.constant dense<0.000000e+00> : vector<128xf32>
    %25 = vector.multi_reduction <add>, %22, %cst_9 [0] : vector<256x128xf32> to vector<128xf32>
    %26 = vector.shape_cast %25 : vector<128xf32> to vector<1x128xf32>
    %27 = vector.shape_cast %26 : vector<1x128xf32> to vector<1x1x128xf32>
    %c0_10 = arith.constant 0 : index
    %c0_11 = arith.constant 0 : index
    %c0_12 = arith.constant 0 : index
    %28 = vector.load %arg4[%c0_10, %c0_11, %c0_12] : memref<1x1x128xf32, #tpu.memory_space<vmem>>, vector<1x1x128xf32>
    tpu.vector_store %arg4[%c0_10, %c0_11, %c0_12], %27 {strides = array<i32>} : memref<1x1x128xf32, #tpu.memory_space<vmem>>, vector<1x1x128xf32>,
    %29 = arith.mulf %22, %22 : vector<256x128xf32>
    %cst_13 = arith.constant dense<0.000000e+00> : vector<128xf32>
    %30 = vector.multi_reduction <add>, %29, %cst_13 [0] : vector<256x128xf32> to vector<128xf32>
    %31 = vector.shape_cast %30 : vector<128xf32> to vector<1x128xf32>
    %32 = vector.shape_cast %31 : vector<1x128xf32> to vector<1x1x128xf32>
    %c0_14 = arith.constant 0 : index
    %c0_15 = arith.constant 0 : index
    %c0_16 = arith.constant 0 : index
    %33 = vector.load %arg5[%c0_14, %c0_15, %c0_16] : memref<1x1x128xf32, #tpu.memory_space<vmem>>, vector<1x1x128xf32>
    tpu.vector_store %arg5[%c0_14, %c0_15, %c0_16], %32 {strides = array<i32>} : memref<1x1x128xf32, #tpu.memory_space<vmem>>, vector<1x1x128xf32>,
    return
  }
  func.func @transform_0(%arg0: i32) -> (i32, i32, i32, i32) {
    %c0_i32 = arith.constant 0 : i32
    %c0_i32_0 = arith.constant 0 : i32
    %c0_i32_1 = arith.constant 0 : i32
    %c0_i32_2 = arith.constant 0 : i32
    return %arg0, %c0_i32, %c0_i32_0, %c0_i32_1 : i32, i32, i32, i32
  }
  func.func @transform_1(%arg0: i32) -> (i32, i32) {
    %c0_i32 = arith.constant 0 : i32
    %c0_i32_0 = arith.constant 0 : i32
    %c0_i32_1 = arith.constant 0 : i32
    return %c0_i32, %c0_i32_0 : i32, i32
  }
  func.func @transform_2(%arg0: i32) -> (i32, i32, i32, i32) {
    %c0_i32 = arith.constant 0 : i32
    %c0_i32_0 = arith.constant 0 : i32
    %c0_i32_1 = arith.constant 0 : i32
    %c0_i32_2 = arith.constant 0 : i32
    return %arg0, %c0_i32, %c0_i32_0, %c0_i32_1 : i32, i32, i32, i32
  }
  func.func @transform_3(%arg0: i32) -> (i32, i32, i32) {
    %c0_i32 = arith.constant 0 : i32
    %c0_i32_0 = arith.constant 0 : i32
    %c0_i32_1 = arith.constant 0 : i32
    return %arg0, %c0_i32, %c0_i32_0 : i32, i32, i32
  }
  func.func @transform_4(%arg0: i32) -> (i32, i32, i32) {
    %c0_i32 = arith.constant 0 : i32
    %c0_i32_0 = arith.constant 0 : i32
    %c0_i32_1 = arith.constant 0 : i32
    return %arg0, %c0_i32, %c0_i32_0 : i32, i32, i32
  }
}

</mosaic_0001>

<llo_original>
// kernel: tpu_custom_call.1
$region0: #{tpu_custom_call.1}
  #allocation0 [shape = 'u32[]', space=smem, size = 0x4, offset = 0x4, fixed_abs, tag = 'smem constant byte address 0x4 - core index']
  #allocation1 [shape = 'u32[72,128]{1,0:T(1,128)}', space=vmem, size = 0x9000, scoped, tag = 'internal scratch']
  %s0 = inlined_call_operand.vmem [shape: bf16[2,18,18,4], index: 0, kind: input, shape index: {}]
  %s1 = inlined_call_operand.vmem [shape: bf16[36,128], index: 1, kind: input, shape index: {}]
  %s2 = inlined_call_operand.hbm [shape: f32[2,16,16,128], index: 2, kind: output, shape index: {0}]
  %s3 = inlined_call_operand.hbm [shape: f32[2,1,128], index: 3, kind: output, shape index: {1}]
  %s4 = inlined_call_operand.hbm [shape: f32[2,1,128], index: 4, kind: output, shape index: {2}]
  %5 = xla_tuple %s2, %s3, %s4
  %s6 = sld [smem:[#allocation0]]
  $region57: #{tpu_custom_call.1} parent=0
    _
  %s8 = ssub.s32 1, %s6
  %s9 = scalar_select 0, %s8, %s6
  $region1: #{tpu_custom_call.1} parent=0
    #allocation2 [shape = 'u8[262144]{0}', space=vmem, size = 0x40000, scoped, tag = 'output window, operand 0']
    #allocation3 [shape = 's32[2]{0}', space=sflag, size = 0x8, scoped, tag = 'scoped memory for tpu_custom_call.1']
    #allocation4 [shape = 'u8[1024]{0}', space=vmem, size = 0x400, scoped, tag = 'output window, operand 1']
    #allocation5 [shape = 's32[2]{0}', space=sflag, size = 0x8, scoped, tag = 'scoped memory for tpu_custom_call.1']
    #allocation6 [shape = 'u8[1024]{0}', space=vmem, size = 0x400, scoped, tag = 'output window, operand 2']
    %10 = vsyncpa [#allocation3], 0
    %s11 = scalar_lea.sflag [#allocation3], 1
    %12 = vsyncpa %s11, 0
    %13 = vsyncpa [#allocation5], 0
    %s14 = scalar_lea.sflag [#allocation5], 1
    %15 = vsyncpa %s14, 0
    loop: start=0, step=1, limit=4
    $region2: #{tpu_custom_call.1} parent=1 // loop_pre_header
      _
    $region3: #{tpu_custom_call.1} parent=1 // loop_header
      %s17 = sphi 0, %s21
      %p18 = scmp.ge.s32.totalorder %s17, 4
      %s27 = sphi 0, %s29
      %s30 = sphi 0, %s27
      %s31 = sphi 0, %s30
      %s47 = sphi 0, %s31
      %s51 = sphi 0, %s51
      %s53 = sphi 0, %s51
      %s54 = sphi 0, %s53
      %s68 = sphi 0, %s54
      %s74 = sphi 0, %s76
      %s77 = sphi 0, %s74
      %s78 = sphi 0, %s77
      %s94 = sphi 0, %s78
      %s100 = sphi 0, %s102
      %s103 = sphi 0, %s100
      %s104 = sphi 0, %s103
      %s120 = sphi 0, %s104
      %s126 = sphi 0, %s128
      %s129 = sphi 0, %s126
      %s130 = sphi 0, %s129
      %s146 = sphi 0, %s130
    $region4: #{tpu_custom_call.1} parent=1 // loop_header_branch
      %20 = sbr.rel (%p18) target = $region8
    $region5: #{tpu_custom_call.1} parent=1 // loop_body
      %s22 = ssub.s32 %s17, 1
      %s23 = ssub.s32 %s17, 2
      %s24 = sadd.s32 %s17, 1
      %s25 = ssub.s32 %s17, %s24
      %p26 = scmp.eq.s32.totalorder %s25, 0
      %s28 = sadd.s32 %s27, 1
      %s29 = scalar_select %p26, %s27, %s28
      %p32 = pneg %p26
      %p33 = scmp.eq.s32.totalorder %s17, 1
      %p34 = por %p32, %p33
      %p35 = scmp.ne.s32.totalorder %s27, %s30
      %p36 = scmp.eq.s32.totalorder %s17, 0
      %p37 = por %p35, %p36
      %p38 = scmp.ne.s32.totalorder %s27, %s30
      %p39 = scmp.eq.s32.totalorder %s22, 1
      %p40 = por %p38, %p39
      %p41 = scmp.ne.s32.totalorder %s30, %s31
      %p42 = scmp.eq.s32.totalorder %s22, 0
      %p43 = por %p41, %p42
      %p44 = scmp.ne.s32.totalorder %s30, %s31
      %p45 = scmp.eq.s32.totalorder %s23, 1
      %p46 = por %p44, %p45
      %p48 = scmp.ne.s32.totalorder %s31, %s47
      %p49 = scmp.eq.s32.totalorder %s23, 0
      %p50 = por %p48, %p49
      %s52 = sadd.s32 %s51, 1
      %p55 = scmp.eq.s32.totalorder %s17, 1
      %p56 = scmp.ne.s32.totalorder %s51, %s53
      %p57 = scmp.eq.s32.totalorder %s17, 0
      %p58 = por %p56, %p57
      %p59 = scmp.ne.s32.totalorder %s51, %s53
      %p60 = scmp.eq.s32.totalorder %s22, 1
      %p61 = por %p59, %p60
      %p62 = scmp.ne.s32.totalorder %s53, %s54
      %p63 = scmp.eq.s32.totalorder %s22, 0
      %p64 = por %p62, %p63
      %p65 = scmp.ne.s32.totalorder %s53, %s54
      %p66 = scmp.eq.s32.totalorder %s23, 1
      %p67 = por %p65, %p66
      %p69 = scmp.ne.s32.totalorder %s54, %s68
      %p70 = scmp.eq.s32.totalorder %s23, 0
      %p71 = por %p69, %p70
      %s72 = ssub.s32 %s17, %s24
      %p73 = scmp.eq.s32.totalorder %s72, 0
      %s75 = sadd.s32 %s74, 1
      %s76 = scalar_select %p73, %s74, %s75
      %p79 = pneg %p73
      %p80 = scmp.eq.s32.totalorder %s17, 1
      %p81 = por %p79, %p80
      %p82 = scmp.ne.s32.totalorder %s74, %s77
      %p83 = scmp.eq.s32.totalorder %s17, 0
      %p84 = por %p82, %p83
      %p85 = scmp.ne.s32.totalorder %s74, %s77
      %p86 = scmp.eq.s32.totalorder %s22, 1
      %p87 = por %p85, %p86
      %p88 = scmp.ne.s32.totalorder %s77, %s78
      %p89 = scmp.eq.s32.totalorder %s22, 0
      %p90 = por %p88, %p89
      %p91 = scmp.ne.s32.totalorder %s77, %s78
      %p92 = scmp.eq.s32.totalorder %s23, 1
      %p93 = por %p91, %p92
      %p95 = scmp.ne.s32.totalorder %s78, %s94
      %p96 = scmp.eq.s32.totalorder %s23, 0
      %p97 = por %p95, %p96
      %s98 = ssub.s32 %s17, %s24
      %p99 = scmp.eq.s32.totalorder %s98, 0
      %s101 = sadd.s32 %s100, 1
      %s102 = scalar_select %p99, %s100, %s101
      %p105 = pneg %p99
      %p106 = scmp.eq.s32.totalorder %s17, 1
      %p107 = por %p105, %p106
      %p108 = scmp.ne.s32.totalorder %s100, %s103
      %p109 = scmp.eq.s32.totalorder %s17, 0
      %p110 = por %p108, %p109
      %p111 = scmp.ne.s32.totalorder %s100, %s103
      %p112 = scmp.eq.s32.totalorder %s22, 1
      %p113 = por %p111, %p112
      %p114 = scmp.ne.s32.totalorder %s103, %s104
      %p115 = scmp.eq.s32.totalorder %s22, 0
      %p116 = por %p114, %p115
      %p117 = scmp.ne.s32.totalorder %s103, %s104
      %p118 = scmp.eq.s32.totalorder %s23, 1
      %p119 = por %p117, %p118
      %p121 = scmp.ne.s32.totalorder %s104, %s120
      %p122 = scmp.eq.s32.totalorder %s23, 0
      %p123 = por %p121, %p122
      %s124 = ssub.s32 %s17, %s24
      %p125 = scmp.eq.s32.totalorder %s124, 0
      %s127 = sadd.s32 %s126, 1
      %s128 = scalar_select %p125, %s126, %s127
      %p131 = pneg %p125
      %p132 = scmp.eq.s32.totalorder %s17, 1
      %p133 = por %p131, %p132
      %p134 = scmp.ne.s32.totalorder %s126, %s129
      %p135 = scmp.eq.s32.totalorder %s17, 0
      %p136 = por %p134, %p135
      %p137 = scmp.ne.s32.totalorder %s126, %s129
      %p138 = scmp.eq.s32.totalorder %s22, 1
      %p139 = por %p137, %p138
      %p140 = scmp.ne.s32.totalorder %s129, %s130
      %p141 = scmp.eq.s32.totalorder %s22, 0
      %p142 = por %p140, %p141
      %p143 = scmp.ne.s32.totalorder %s129, %s130
      %p144 = scmp.eq.s32.totalorder %s23, 1
      %p145 = por %p143, %p144
      %p147 = scmp.ne.s32.totalorder %s130, %s146
      %p148 = scmp.eq.s32.totalorder %s23, 0
      %p149 = por %p147, %p148
      %p150 = scmp.le.s32.totalorder 1, %s17
      %p151 = scmp.lt.s32.totalorder %s17, 3
      %p152 = pnand %p150, %p151
      %p153 = pneg %p152
      // Predicated region
      $region9: #{tpu_custom_call.1} parent=5 // pred_check
        _
      $region10: #{tpu_custom_call.1} parent=5 // pred_check_branch
        %155 = sbr.rel (%p152) target = $region12
      $region11: #{tpu_custom_call.1} parent=5 // pred_region
        %s156 = ssub.s32 %s17, 1
        // Predicated region
        $region13: #{tpu_custom_call.1} parent=11 // pred_check
          %p157 = pneg %p64
        $region14: #{tpu_custom_call.1} parent=11 // pred_check_branch
          %159 = sbr.rel (%p157) target = $region16
        $region15: #{tpu_custom_call.1} parent=11 // pred_region
          _
        $region16: #{tpu_custom_call.1} parent=11 // pred_fallthru
          _
      $region12: #{tpu_custom_call.1} parent=5 // pred_fallthru
        _
      %p160 = scmp.lt.s32.totalorder %s17, 2
      // Predicated region
      $region17: #{tpu_custom_call.1} parent=5 // pred_check
        %p161 = pneg %p160
      $region18: #{tpu_custom_call.1} parent=5 // pred_check_branch
        %163 = sbr.rel (%p161) target = $region20
      $region19: #{tpu_custom_call.1} parent=5 // pred_region
        // Predicated region
        $region21: #{tpu_custom_call.1} parent=19 // pred_check
          %p164 = pneg %p37
        $region22: #{tpu_custom_call.1} parent=19 // pred_check_branch
          %166 = sbr.rel (%p164) target = $region24
        $region23: #{tpu_custom_call.1} parent=19 // pred_region
          %p167 = scmp.lt.s32.totalorder %s17, 1
          %s168 = scalar_select %p167, %s17, 1
          %s169 = smul.addr %s168, 54
          %s170 = smul.addr %s169, 4
          %s171 = scalar_lea.vmem %s0, %s170
        $region24: #{tpu_custom_call.1} parent=19 // pred_fallthru
          _
      $region20: #{tpu_custom_call.1} parent=5 // pred_fallthru
        _
      %p172 = scmp.le.s32.totalorder 1, %s17
      %p173 = scmp.lt.s32.totalorder %s17, 3
      %p174 = pnand %p172, %p173
      %p175 = pneg %p174
      // Predicated region
      $region25: #{tpu_custom_call.1} parent=5 // pred_check
        _
      $region26: #{tpu_custom_call.1} parent=5 // pred_check_branch
        %177 = sbr.rel (%p174) target = $region28
      $region27: #{tpu_custom_call.1} parent=5 // pred_region
        %s178 = ssub.s32 %s17, 1
        %p179 = scmp.lt.s32.totalorder %s22, 1
        %s180 = scalar_select %p179, %s22, 1
        %s181 = smul.addr %s180, 54
        %s182 = smul.addr %s181, 4
        %s183 = scalar_lea.vmem %s0, %s182
        %p184 = pneg %p43
        %p185 = pneg %p40
        %p186 = pneg %p64
        %p187 = pneg %p61
        %p188 = pneg %p90
        %p189 = pneg %p87
        %s190 = sand.u32 %s77, 1
        %s191 = scalar_lea.sflag [#allocation3], %s190
        %s192 = sand.u32 %s77, 1
        %s193 = smul.addr %s192, 256
        %s194 = scalar_lea.vmem [#allocation2], %s193
        %p195 = pneg %p116
        %p196 = pneg %p113
        %s197 = sand.u32 %s22, 1
        %s198 = scalar_lea.sflag [#allocation5], %s197
        %s199 = sand.u32 %s103, 1
        %s200 = scalar_lea.vmem [#allocation4], %s199
        %p201 = pneg %p142
        %p202 = pneg %p139
        %s203 = sand.u32 %s22, 1
        %s204 = scalar_lea.sflag [#allocation5], %s203
        %s205 = sand.u32 %s129, 1
        %s206 = scalar_lea.vmem [#allocation6], %s205
        %p207 = scmp.lt.s32.totalorder %s22, 1
        %s208 = scalar_select %p207, %s22, 1
        %s209 = smul.addr %s208, 54
        %s210 = smul.addr %s209, 4
        %s211 = scalar_lea.vmem %s0, %s210
        %v213 = vld [vmem:[%s211] sm:$0xf]
        %v214 = vld [vmem:[%s211 + $0x4] sm:$0xf]
        %v215 = vld [vmem:[%s211 + $0x8] sm:$0x1]
        %v216 = vld [vmem:[%s211 + $0xc] sm:$0xf]
        %v217 = vld [vmem:[%s211 + $0x10] sm:$0xf]
        %v218 = vld [vmem:[%s211 + $0x14] sm:$0x1]
        %v219 = vld [vmem:[%s211 + $0x18] sm:$0xf]
        %v220 = vld [vmem:[%s211 + $0x1c] sm:$0xf]
        %v221 = vld [vmem:[%s211 + $0x20] sm:$0x1]
        %v222 = vld [vmem:[%s211 + $0x24] sm:$0xf]
        %v223 = vld [vmem:[%s211 + $0x28] sm:$0xf]
        %v224 = vld [vmem:[%s211 + $0x2c] sm:$0x1]
        %v225 = vld [vmem:[%s211 + $0x30] sm:$0xf]
        %v226 = vld [vmem:[%s211 + $0x34] sm:$0xf]
        %v227 = vld [vmem:[%s211 + $0x38] sm:$0x1]
        %v228 = vld [vmem:[%s211 + $0x3c] sm:$0xf]
        %v229 = vld [vmem:[%s211 + $0x40] sm:$0xf]
        %v230 = vld [vmem:[%s211 + $0x44] sm:$0x1]
        %v231 = vld [vmem:[%s211 + $0x48] sm:$0xf]
        %v232 = vld [vmem:[%s211 + $0x4c] sm:$0xf]
        %v233 = vld [vmem:[%s211 + $0x50] sm:$0x1]
        %v234 = vld [vmem:[%s211 + $0x54] sm:$0xf]
        %v235 = vld [vmem:[%s211 + $0x58] sm:$0xf]
        %v236 = vld [vmem:[%s211 + $0x5c] sm:$0x1]
        %v237 = vld [vmem:[%s211 + $0x60] sm:$0xf]
        %v238 = vld [vmem:[%s211 + $0x64] sm:$0xf]
        %v239 = vld [vmem:[%s211 + $0x68] sm:$0x1]
        %v240 = vld [vmem:[%s211 + $0x6c] sm:$0xf]
        %v241 = vld [vmem:[%s211 + $0x70] sm:$0xf]
        %v242 = vld [vmem:[%s211 + $0x74] sm:$0x1]
        %v243 = vld [vmem:[%s211 + $0x78] sm:$0xf]
        %v244 = vld [vmem:[%s211 + $0x7c] sm:$0xf]
        %v245 = vld [vmem:[%s211 + $0x80] sm:$0x1]
        %v246 = vld [vmem:[%s211 + $0x84] sm:$0xf]
        %v247 = vld [vmem:[%s211 + $0x88] sm:$0xf]
        %v248 = vld [vmem:[%s211 + $0x8c] sm:$0x1]
        %v249 = vld [vmem:[%s211 + $0x90] sm:$0xf]
        %v250 = vld [vmem:[%s211 + $0x94] sm:$0xf]
        %v251 = vld [vmem:[%s211 + $0x98] sm:$0x1]
        %v252 = vld [vmem:[%s211 + $0x9c] sm:$0xf]
        %v253 = vld [vmem:[%s211 + $0xa0] sm:$0xf]
        %v254 = vld [vmem:[%s211 + $0xa4] sm:$0x1]
        %v255 = vld [vmem:[%s211 + $0xa8] sm:$0xf]
        %v256 = vld [vmem:[%s211 + $0xac] sm:$0xf]
        %v257 = vld [vmem:[%s211 + $0xb0] sm:$0x1]
        %v258 = vld [vmem:[%s211 + $0xb4] sm:$0xf]
        %v259 = vld [vmem:[%s211 + $0xb8] sm:$0xf]
        %v260 = vld [vmem:[%s211 + $0xbc] sm:$0x1]
        %v261 = vld [vmem:[%s211 + $0xc0] sm:$0xf]
        %v262 = vld [vmem:[%s211 + $0xc4] sm:$0xf]
        %v263 = vld [vmem:[%s211 + $0xc8] sm:$0x1]
        %v264 = vld [vmem:[%s211 + $0xcc] sm:$0xf]
        %v265 = vld [vmem:[%s211 + $0xd0] sm:$0xf]
        %v266 = vld [vmem:[%s211 + $0xd4] sm:$0x1]
        %vm267 = vsmask.f32 3328
        %vm268 = vsmask.f32 7440
        %vm269 = vmor %vm267, %vm268
        %v271 = vshrl.u32 %v213, 16
        %v273 = vrot.slane %v271, 4
        %v274 = vshll.u32 %v213, 16
        %v276 = vrot.slane %v274, 5
        %v277 = vor.u32 %v273, %v276
        %v278 = vrot.slane %v277, 4
        %v280 = vshll.u32 %v214, 16
        %v282 = vrot.slane %v280, 5
        %v283 = vsel %vm269, %v278, %v282
        %v284 = vshrl.u32 %v214, 16
        %v286 = vrot.slane %v284, 4
        %v287 = vor.u32 %v286, %v282
        %v288 = vrot.slane %v287, 4
        %v290 = vshll.u32 %v215, 16
        %v292 = vrot.slane %v290, 5
        %v293 = vsel %vm269, %v288, %v292
        %v295 = vshrl.u32 %v216, 16
        %v297 = vrot.slane %v295, 4
        %v298 = vshll.u32 %v216, 16
        %v300 = vrot.slane %v298, 5
        %v301 = vor.u32 %v297, %v300
        %v302 = vrot.slane %v301, 4
        %v304 = vshll.u32 %v217, 16
        %v306 = vrot.slane %v304, 5
        %v307 = vsel %vm269, %v302, %v306
        %v308 = vshrl.u32 %v217, 16
        %v310 = vrot.slane %v308, 4
        %v311 = vor.u32 %v310, %v306
        %v312 = vrot.slane %v311, 4
        %v314 = vshll.u32 %v218, 16
        %v316 = vrot.slane %v314, 5
        %v317 = vsel %vm269, %v312, %v316
        %v319 = vshrl.u32 %v219, 16
        %v321 = vrot.slane %v319, 4
        %v322 = vshll.u32 %v219, 16
        %v324 = vrot.slane %v322, 5
        %v325 = vor.u32 %v321, %v324
        %v326 = vrot.slane %v325, 4
        %v328 = vshll.u32 %v220, 16
        %v330 = vrot.slane %v328, 5
        %v331 = vsel %vm269, %v326, %v330
        %v332 = vshrl.u32 %v220, 16
        %v334 = vrot.slane %v332, 4
        %v335 = vor.u32 %v334, %v330
        %v336 = vrot.slane %v335, 4
        %v338 = vshll.u32 %v221, 16
        %v340 = vrot.slane %v338, 5
        %v341 = vsel %vm269, %v336, %v340
        %v343 = vshrl.u32 %v222, 16
        %v345 = vrot.slane %v343, 4
        %v346 = vshll.u32 %v222, 16
        %v348 = vrot.slane %v346, 5
        %v349 = vor.u32 %v345, %v348
        %v350 = vrot.slane %v349, 4
        %v352 = vshll.u32 %v223, 16
        %v354 = vrot.slane %v352, 5
        %v355 = vsel %vm269, %v350, %v354
        %v356 = vshrl.u32 %v223, 16
        %v358 = vrot.slane %v356, 4
        %v359 = vor.u32 %v358, %v354
        %v360 = vrot.slane %v359, 4
        %v362 = vshll.u32 %v224, 16
        %v364 = vrot.slane %v362, 5
        %v365 = vsel %vm269, %v360, %v364
        %v367 = vshrl.u32 %v225, 16
        %v369 = vrot.slane %v367, 4
        %v370 = vshll.u32 %v225, 16
        %v372 = vrot.slane %v370, 5
        %v373 = vor.u32 %v369, %v372
        %v374 = vrot.slane %v373, 4
        %v376 = vshll.u32 %v226, 16
        %v378 = vrot.slane %v376, 5
        %v379 = vsel %vm269, %v374, %v378
        %v380 = vshrl.u32 %v226, 16
        %v382 = vrot.slane %v380, 4
        %v383 = vor.u32 %v382, %v378
        %v384 = vrot.slane %v383, 4
        %v386 = vshll.u32 %v227, 16
        %v388 = vrot.slane %v386, 5
        %v389 = vsel %vm269, %v384, %v388
        %v391 = vshrl.u32 %v228, 16
        %v393 = vrot.slane %v391, 4
        %v394 = vshll.u32 %v228, 16
        %v396 = vrot.slane %v394, 5
        %v397 = vor.u32 %v393, %v396
        %v398 = vrot.slane %v397, 4
        %v400 = vshll.u32 %v229, 16
        %v402 = vrot.slane %v400, 5
        %v403 = vsel %vm269, %v398, %v402
        %v404 = vshrl.u32 %v229, 16
        %v406 = vrot.slane %v404, 4
        %v407 = vor.u32 %v406, %v402
        %v408 = vrot.slane %v407, 4
        %v410 = vshll.u32 %v230, 16
        %v412 = vrot.slane %v410, 5
        %v413 = vsel %vm269, %v408, %v412
        %v415 = vshrl.u32 %v231, 16
        %v417 = vrot.slane %v415, 4
        %v418 = vshll.u32 %v231, 16
        %v420 = vrot.slane %v418, 5
        %v421 = vor.u32 %v417, %v420
        %v422 = vrot.slane %v421, 4
        %v424 = vshll.u32 %v232, 16
        %v426 = vrot.slane %v424, 5
        %v427 = vsel %vm269, %v422, %v426
        %v428 = vshrl.u32 %v232, 16
        %v430 = vrot.slane %v428, 4
        %v431 = vor.u32 %v430, %v426
        %v432 = vrot.slane %v431, 4
        %v434 = vshll.u32 %v233, 16
        %v436 = vrot.slane %v434, 5
        %v437 = vsel %vm269, %v432, %v436
        %v439 = vshrl.u32 %v234, 16
        %v441 = vrot.slane %v439, 4
        %v442 = vshll.u32 %v234, 16
        %v444 = vrot.slane %v442, 5
        %v445 = vor.u32 %v441, %v444
        %v446 = vrot.slane %v445, 4
        %v448 = vshll.u32 %v235, 16
        %v450 = vrot.slane %v448, 5
        %v451 = vsel %vm269, %v446, %v450
        %v452 = vshrl.u32 %v235, 16
        %v454 = vrot.slane %v452, 4
        %v455 = vor.u32 %v454, %v450
        %v456 = vrot.slane %v455, 4
        %v458 = vshll.u32 %v236, 16
        %v460 = vrot.slane %v458, 5
        %v461 = vsel %vm269, %v456, %v460
        %v463 = vshrl.u32 %v237, 16
        %v465 = vrot.slane %v463, 4
        %v466 = vshll.u32 %v237, 16
        %v468 = vrot.slane %v466, 5
        %v469 = vor.u32 %v465, %v468
        %v470 = vrot.slane %v469, 4
        %v472 = vshll.u32 %v238, 16
        %v474 = vrot.slane %v472, 5
        %v475 = vsel %vm269, %v470, %v474
        %v476 = vshrl.u32 %v238, 16
        %v478 = vrot.slane %v476, 4
        %v479 = vor.u32 %v478, %v474
        %v480 = vrot.slane %v479, 4
        %v482 = vshll.u32 %v239, 16
        %v484 = vrot.slane %v482, 5
        %v485 = vsel %vm269, %v480, %v484
        %v487 = vshrl.u32 %v240, 16
        %v489 = vrot.slane %v487, 4
        %v490 = vshll.u32 %v240, 16
        %v492 = vrot.slane %v490, 5
        %v493 = vor.u32 %v489, %v492
        %v494 = vrot.slane %v493, 4
        %v496 = vshll.u32 %v241, 16
        %v498 = vrot.slane %v496, 5
        %v499 = vsel %vm269, %v494, %v498
        %v500 = vshrl.u32 %v241, 16
        %v502 = vrot.slane %v500, 4
        %v503 = vor.u32 %v502, %v498
        %v504 = vrot.slane %v503, 4
        %v506 = vshll.u32 %v242, 16
        %v508 = vrot.slane %v506, 5
        %v509 = vsel %vm269, %v504, %v508
        %v511 = vshrl.u32 %v243, 16
        %v513 = vrot.slane %v511, 4
        %v514 = vshll.u32 %v243, 16
        %v516 = vrot.slane %v514, 5
        %v517 = vor.u32 %v513, %v516
        %v518 = vrot.slane %v517, 4
        %v520 = vshll.u32 %v244, 16
        %v522 = vrot.slane %v520, 5
        %v523 = vsel %vm269, %v518, %v522
        %v524 = vshrl.u32 %v244, 16
        %v526 = vrot.slane %v524, 4
        %v527 = vor.u32 %v526, %v522
        %v528 = vrot.slane %v527, 4
        %v530 = vshll.u32 %v245, 16
        %v532 = vrot.slane %v530, 5
        %v533 = vsel %vm269, %v528, %v532
        %v535 = vshrl.u32 %v246, 16
        %v537 = vrot.slane %v535, 4
        %v538 = vshll.u32 %v246, 16
        %v540 = vrot.slane %v538, 5
        %v541 = vor.u32 %v537, %v540
        %v542 = vrot.slane %v541, 4
        %v544 = vshll.u32 %v247, 16
        %v546 = vrot.slane %v544, 5
        %v547 = vsel %vm269, %v542, %v546
        %v548 = vshrl.u32 %v247, 16
        %v550 = vrot.slane %v548, 4
        %v551 = vor.u32 %v550, %v546
        %v552 = vrot.slane %v551, 4
        %v554 = vshll.u32 %v248, 16
        %v556 = vrot.slane %v554, 5
        %v557 = vsel %vm269, %v552, %v556
        %v559 = vshrl.u32 %v249, 16
        %v561 = vrot.slane %v559, 4
        %v562 = vshll.u32 %v249, 16
        %v564 = vrot.slane %v562, 5
        %v565 = vor.u32 %v561, %v564
        %v566 = vrot.slane %v565, 4
        %v568 = vshll.u32 %v250, 16
        %v570 = vrot.slane %v568, 5
        %v571 = vsel %vm269, %v566, %v570
        %v572 = vshrl.u32 %v250, 16
        %v574 = vrot.slane %v572, 4
        %v575 = vor.u32 %v574, %v570
        %v576 = vrot.slane %v575, 4
        %v578 = vshll.u32 %v251, 16
        %v580 = vrot.slane %v578, 5
        %v581 = vsel %vm269, %v576, %v580
        %v583 = vshrl.u32 %v252, 16
        %v585 = vrot.slane %v583, 4
        %v586 = vshll.u32 %v252, 16
        %v588 = vrot.slane %v586, 5
        %v589 = vor.u32 %v585, %v588
        %v590 = vrot.slane %v589, 4
        %v592 = vshll.u32 %v253, 16
        %v594 = vrot.slane %v592, 5
        %v595 = vsel %vm269, %v590, %v594
        %v596 = vshrl.u32 %v253, 16
        %v598 = vrot.slane %v596, 4
        %v599 = vor.u32 %v598, %v594
        %v600 = vrot.slane %v599, 4
        %v602 = vshll.u32 %v254, 16
        %v604 = vrot.slane %v602, 5
        %v605 = vsel %vm269, %v600, %v604
        %v607 = vshrl.u32 %v255, 16
        %v609 = vrot.slane %v607, 4
        %v610 = vshll.u32 %v255, 16
        %v612 = vrot.slane %v610, 5
        %v613 = vor.u32 %v609, %v612
        %v614 = vrot.slane %v613, 4
        %v616 = vshll.u32 %v256, 16
        %v618 = vrot.slane %v616, 5
        %v619 = vsel %vm269, %v614, %v618
        %v620 = vshrl.u32 %v256, 16
        %v622 = vrot.slane %v620, 4
        %v623 = vor.u32 %v622, %v618
        %v624 = vrot.slane %v623, 4
        %v626 = vshll.u32 %v257, 16
        %v628 = vrot.slane %v626, 5
        %v629 = vsel %vm269, %v624, %v628
        %v631 = vshrl.u32 %v258, 16
        %v633 = vrot.slane %v631, 4
        %v634 = vshll.u32 %v258, 16
        %v636 = vrot.slane %v634, 5
        %v637 = vor.u32 %v633, %v636
        %v638 = vrot.slane %v637, 4
        %v640 = vshll.u32 %v259, 16
        %v642 = vrot.slane %v640, 5
        %v643 = vsel %vm269, %v638, %v642
        %v644 = vshrl.u32 %v259, 16
        %v646 = vrot.slane %v644, 4
        %v647 = vor.u32 %v646, %v642
        %v648 = vrot.slane %v647, 4
        %v650 = vshll.u32 %v260, 16
        %v652 = vrot.slane %v650, 5
        %v653 = vsel %vm269, %v648, %v652
        %vm702 = vcmask 1042432
        %vm703 = vcmask 1046532
        %vm704 = vmor %vm702, %vm703
        %v705 = vrot.slane %v213, 5
        %v706 = vrot.slane %v705, 4
        %v707 = vrot.slane %v214, 5
        %v708 = vsel %vm704, %v706, %v707
        %v709 = vrot.slane %v707, 4
        %v710 = vrot.slane %v215, 5
        %v711 = vsel %vm704, %v709, %v710
        %v712 = vrot.slane %v216, 5
        %v713 = vrot.slane %v712, 4
        %v714 = vrot.slane %v217, 5
        %v715 = vsel %vm704, %v713, %v714
        %v716 = vrot.slane %v714, 4
        %v717 = vrot.slane %v218, 5
        %v718 = vsel %vm704, %v716, %v717
        %v719 = vrot.slane %v219, 5
        %v720 = vrot.slane %v719, 4
        %v721 = vrot.slane %v220, 5
        %v722 = vsel %vm704, %v720, %v721
        %v723 = vrot.slane %v721, 4
        %v724 = vrot.slane %v221, 5
        %v725 = vsel %vm704, %v723, %v724
        %v726 = vrot.slane %v222, 5
        %v727 = vrot.slane %v726, 4
        %v728 = vrot.slane %v223, 5
        %v729 = vsel %vm704, %v727, %v728
        %v730 = vrot.slane %v728, 4
        %v731 = vrot.slane %v224, 5
        %v732 = vsel %vm704, %v730, %v731
        %v733 = vrot.slane %v225, 5
        %v734 = vrot.slane %v733, 4
        %v735 = vrot.slane %v226, 5
        %v736 = vsel %vm704, %v734, %v735
        %v737 = vrot.slane %v735, 4
        %v738 = vrot.slane %v227, 5
        %v739 = vsel %vm704, %v737, %v738
        %v740 = vrot.slane %v228, 5
        %v741 = vrot.slane %v740, 4
        %v742 = vrot.slane %v229, 5
        %v743 = vsel %vm704, %v741, %v742
        %v744 = vrot.slane %v742, 4
        %v745 = vrot.slane %v230, 5
        %v746 = vsel %vm704, %v744, %v745
        %v747 = vrot.slane %v231, 5
        %v748 = vrot.slane %v747, 4
        %v749 = vrot.slane %v232, 5
        %v750 = vsel %vm704, %v748, %v749
        %v751 = vrot.slane %v749, 4
        %v752 = vrot.slane %v233, 5
        %v753 = vsel %vm704, %v751, %v752
        %v754 = vrot.slane %v234, 5
        %v755 = vrot.slane %v754, 4
        %v756 = vrot.slane %v235, 5
        %v757 = vsel %vm704, %v755, %v756
        %v758 = vrot.slane %v756, 4
        %v759 = vrot.slane %v236, 5
        %v760 = vsel %vm704, %v758, %v759
        %v761 = vrot.slane %v237, 5
        %v762 = vrot.slane %v761, 4
        %v763 = vrot.slane %v238, 5
        %v764 = vsel %vm704, %v762, %v763
        %v765 = vrot.slane %v763, 4
        %v766 = vrot.slane %v239, 5
        %v767 = vsel %vm704, %v765, %v766
        %v768 = vrot.slane %v240, 5
        %v769 = vrot.slane %v768, 4
        %v770 = vrot.slane %v241, 5
        %v771 = vsel %vm704, %v769, %v770
        %v772 = vrot.slane %v770, 4
        %v773 = vrot.slane %v242, 5
        %v774 = vsel %vm704, %v772, %v773
        %v775 = vrot.slane %v243, 5
        %v776 = vrot.slane %v775, 4
        %v777 = vrot.slane %v244, 5
        %v778 = vsel %vm704, %v776, %v777
        %v779 = vrot.slane %v777, 4
        %v780 = vrot.slane %v245, 5
        %v781 = vsel %vm704, %v779, %v780
        %v782 = vrot.slane %v246, 5
        %v783 = vrot.slane %v782, 4
        %v784 = vrot.slane %v247, 5
        %v785 = vsel %vm704, %v783, %v784
        %v786 = vrot.slane %v784, 4
        %v787 = vrot.slane %v248, 5
        %v788 = vsel %vm704, %v786, %v787
        %v789 = vrot.slane %v249, 5
        %v790 = vrot.slane %v789, 4
        %v791 = vrot.slane %v250, 5
        %v792 = vsel %vm704, %v790, %v791
        %v793 = vrot.slane %v791, 4
        %v794 = vrot.slane %v251, 5
        %v795 = vsel %vm704, %v793, %v794
        %v796 = vrot.slane %v252, 5
        %v797 = vrot.slane %v796, 4
        %v798 = vrot.slane %v253, 5
        %v799 = vsel %vm704, %v797, %v798
        %v800 = vrot.slane %v798, 4
        %v801 = vrot.slane %v254, 5
        %v802 = vsel %vm704, %v800, %v801
        %v803 = vrot.slane %v255, 5
        %v804 = vrot.slane %v803, 4
        %v805 = vrot.slane %v256, 5
        %v806 = vsel %vm704, %v804, %v805
        %v807 = vrot.slane %v805, 4
        %v808 = vrot.slane %v257, 5
        %v809 = vsel %vm704, %v807, %v808
        %v810 = vrot.slane %v258, 5
        %v811 = vrot.slane %v810, 4
        %v812 = vrot.slane %v259, 5
        %v813 = vsel %vm704, %v811, %v812
        %v814 = vrot.slane %v812, 4
        %v815 = vrot.slane %v260, 5
        %v816 = vsel %vm704, %v814, %v815
        %v818 = vshrl.u32 %v261, 16
        %v820 = vrot.slane %v818, 4
        %v821 = vshll.u32 %v261, 16
        %v823 = vrot.slane %v821, 5
        %v824 = vor.u32 %v820, %v823
        %v825 = vrot.slane %v824, 4
        %v827 = vshll.u32 %v262, 16
        %v829 = vrot.slane %v827, 5
        %v830 = vsel %vm269, %v825, %v829
        %v831 = vshrl.u32 %v262, 16
        %v833 = vrot.slane %v831, 4
        %v834 = vor.u32 %v833, %v829
        %v835 = vrot.slane %v834, 4
        %v837 = vshll.u32 %v263, 16
        %v839 = vrot.slane %v837, 5
        %v840 = vsel %vm269, %v835, %v839
        %v844 = vrot.slane %v261, 5
        %v845 = vrot.slane %v844, 4
        %v846 = vrot.slane %v262, 5
        %v847 = vsel %vm704, %v845, %v846
        %v848 = vrot.slane %v846, 4
        %v849 = vrot.slane %v263, 5
        %v850 = vsel %vm704, %v848, %v849
        %v852 = vshrl.u32 %v264, 16
        %v854 = vrot.slane %v852, 4
        %v855 = vshll.u32 %v264, 16
        %v857 = vrot.slane %v855, 5
        %v858 = vor.u32 %v854, %v857
        %v859 = vrot.slane %v858, 4
        %v861 = vshll.u32 %v265, 16
        %v863 = vrot.slane %v861, 5
        %v864 = vsel %vm269, %v859, %v863
        %v865 = vshrl.u32 %v265, 16
        %v867 = vrot.slane %v865, 4
        %v868 = vor.u32 %v867, %v863
        %v869 = vrot.slane %v868, 4
        %v871 = vshll.u32 %v266, 16
        %v873 = vrot.slane %v871, 5
        %v874 = vsel %vm269, %v869, %v873
        %v878 = vrot.slane %v264, 5
        %v879 = vrot.slane %v878, 4
        %v880 = vrot.slane %v265, 5
        %v881 = vsel %vm704, %v879, %v880
        %v882 = vrot.slane %v880, 4
        %v883 = vrot.slane %v266, 5
        %v884 = vsel %vm704, %v882, %v883
        %v885 = vunpack.c.l.b16 %v213
        %v886 = vunpack.c.l.b16 %v214
        %v887 = vunpack.c.l.b16 %v216
        %v888 = vunpack.c.l.b16 %v217
        %v889 = vunpack.c.l.b16 %v219
        %v890 = vunpack.c.l.b16 %v220
        %v891 = vunpack.c.l.b16 %v222
        %v892 = vunpack.c.l.b16 %v223
        %v893 = vunpack.c.l.b16 %v225
        %v894 = vunpack.c.l.b16 %v226
        %v895 = vunpack.c.l.b16 %v228
        %v896 = vunpack.c.l.b16 %v229
        %v897 = vunpack.c.l.b16 %v231
        %v898 = vunpack.c.l.b16 %v232
        %v899 = vunpack.c.l.b16 %v234
        %v900 = vunpack.c.l.b16 %v235
        %v901 = vunpack.c.l.b16 %v237
        %v902 = vunpack.c.l.b16 %v238
        %v903 = vunpack.c.l.b16 %v240
        %v904 = vunpack.c.l.b16 %v241
        %v905 = vunpack.c.l.b16 %v243
        %v906 = vunpack.c.l.b16 %v244
        %v907 = vunpack.c.l.b16 %v246
        %v908 = vunpack.c.l.b16 %v247
        %v909 = vunpack.c.l.b16 %v249
        %v910 = vunpack.c.l.b16 %v250
        %v911 = vunpack.c.l.b16 %v252
        %v912 = vunpack.c.l.b16 %v253
        %v913 = vunpack.c.l.b16 %v255
        %v914 = vunpack.c.l.b16 %v256
        %v915 = vunpack.c.l.b16 %v258
        %v916 = vunpack.c.l.b16 %v259
        %v917 = vpack.c.b16 %v886, %v885
        %v918 = vpack.c.b16 %v888, %v887
        %v919 = vpack.c.b16 %v890, %v889
        %v920 = vpack.c.b16 %v892, %v891
        %v921 = vpack.c.b16 %v894, %v893
        %v922 = vpack.c.b16 %v896, %v895
        %v923 = vpack.c.b16 %v898, %v897
        %v924 = vpack.c.b16 %v900, %v899
        %v925 = vpack.c.b16 %v902, %v901
        %v926 = vpack.c.b16 %v904, %v903
        %v927 = vpack.c.b16 %v906, %v905
        %v928 = vpack.c.b16 %v908, %v907
        %v929 = vpack.c.b16 %v910, %v909
        %v930 = vpack.c.b16 %v912, %v911
        %v931 = vpack.c.b16 %v914, %v913
        %v932 = vpack.c.b16 %v916, %v915
        %v933 = vunpack.c.l.b16 %v283
        %v934 = vunpack.c.l.b16 %v293
        %v935 = vunpack.c.l.b16 %v307
        %v936 = vunpack.c.l.b16 %v317
        %v937 = vunpack.c.l.b16 %v331
        %v938 = vunpack.c.l.b16 %v341
        %v939 = vunpack.c.l.b16 %v355
        %v940 = vunpack.c.l.b16 %v365
        %v941 = vunpack.c.l.b16 %v379
        %v942 = vunpack.c.l.b16 %v389
        %v943 = vunpack.c.l.b16 %v403
        %v944 = vunpack.c.l.b16 %v413
        %v945 = vunpack.c.l.b16 %v427
        %v946 = vunpack.c.l.b16 %v437
        %v947 = vunpack.c.l.b16 %v451
        %v948 = vunpack.c.l.b16 %v461
        %v949 = vunpack.c.l.b16 %v475
        %v950 = vunpack.c.l.b16 %v485
        %v951 = vunpack.c.l.b16 %v499
        %v952 = vunpack.c.l.b16 %v509
        %v953 = vunpack.c.l.b16 %v523
        %v954 = vunpack.c.l.b16 %v533
        %v955 = vunpack.c.l.b16 %v547
        %v956 = vunpack.c.l.b16 %v557
        %v957 = vunpack.c.l.b16 %v571
        %v958 = vunpack.c.l.b16 %v581
        %v959 = vunpack.c.l.b16 %v595
        %v960 = vunpack.c.l.b16 %v605
        %v961 = vunpack.c.l.b16 %v619
        %v962 = vunpack.c.l.b16 %v629
        %v963 = vunpack.c.l.b16 %v643
        %v964 = vunpack.c.l.b16 %v653
        %v965 = vpack.c.b16 %v934, %v933
        %v966 = vpack.c.b16 %v936, %v935
        %v967 = vpack.c.b16 %v938, %v937
        %v968 = vpack.c.b16 %v940, %v939
        %v969 = vpack.c.b16 %v942, %v941
        %v970 = vpack.c.b16 %v944, %v943
        %v971 = vpack.c.b16 %v946, %v945
        %v972 = vpack.c.b16 %v948, %v947
        %v973 = vpack.c.b16 %v950, %v949
        %v974 = vpack.c.b16 %v952, %v951
        %v975 = vpack.c.b16 %v954, %v953
        %v976 = vpack.c.b16 %v956, %v955
        %v977 = vpack.c.b16 %v958, %v957
        %v978 = vpack.c.b16 %v960, %v959
        %v979 = vpack.c.b16 %v962, %v961
        %v980 = vpack.c.b16 %v964, %v963
        %981 = vrot.lane.b32.xlu0 %v965, 4
        %v982 = vpop.permute.xlu0 %981
        %983 = vrot.lane.b32.xlu0 %v966, 4
        %v984 = vpop.permute.xlu0 %983
        %985 = vrot.lane.b32.xlu0 %v967, 4
        %v986 = vpop.permute.xlu0 %985
        %987 = vrot.lane.b32.xlu0 %v968, 4
        %v988 = vpop.permute.xlu0 %987
        %989 = vrot.lane.b32.xlu0 %v969, 4
        %v990 = vpop.permute.xlu0 %989
        %991 = vrot.lane.b32.xlu0 %v970, 4
        %v992 = vpop.permute.xlu0 %991
        %993 = vrot.lane.b32.xlu0 %v971, 4
        %v994 = vpop.permute.xlu0 %993
        %995 = vrot.lane.b32.xlu0 %v972, 4
        %v996 = vpop.permute.xlu0 %995
        %997 = vrot.lane.b32.xlu0 %v973, 4
        %v998 = vpop.permute.xlu0 %997
        %999 = vrot.lane.b32.xlu0 %v974, 4
        %v1000 = vpop.permute.xlu0 %999
        %1001 = vrot.lane.b32.xlu0 %v975, 4
        %v1002 = vpop.permute.xlu0 %1001
        %1003 = vrot.lane.b32.xlu0 %v976, 4
        %v1004 = vpop.permute.xlu0 %1003
        %1005 = vrot.lane.b32.xlu0 %v977, 4
        %v1006 = vpop.permute.xlu0 %1005
        %1007 = vrot.lane.b32.xlu0 %v978, 4
        %v1008 = vpop.permute.xlu0 %1007
        %1009 = vrot.lane.b32.xlu0 %v979, 4
        %v1010 = vpop.permute.xlu0 %1009
        %1011 = vrot.lane.b32.xlu0 %v980, 4
        %v1012 = vpop.permute.xlu0 %1011
        %v1013 = vunpack.c.l.b16 %v708
        %v1014 = vunpack.c.l.b16 %v711
        %v1015 = vunpack.c.l.b16 %v715
        %v1016 = vunpack.c.l.b16 %v718
        %v1017 = vunpack.c.l.b16 %v722
        %v1018 = vunpack.c.l.b16 %v725
        %v1019 = vunpack.c.l.b16 %v729
        %v1020 = vunpack.c.l.b16 %v732
        %v1021 = vunpack.c.l.b16 %v736
        %v1022 = vunpack.c.l.b16 %v739
        %v1023 = vunpack.c.l.b16 %v743
        %v1024 = vunpack.c.l.b16 %v746
        %v1025 = vunpack.c.l.b16 %v750
        %v1026 = vunpack.c.l.b16 %v753
        %v1027 = vunpack.c.l.b16 %v757
        %v1028 = vunpack.c.l.b16 %v760
        %v1029 = vunpack.c.l.b16 %v764
        %v1030 = vunpack.c.l.b16 %v767
        %v1031 = vunpack.c.l.b16 %v771
        %v1032 = vunpack.c.l.b16 %v774
        %v1033 = vunpack.c.l.b16 %v778
        %v1034 = vunpack.c.l.b16 %v781
        %v1035 = vunpack.c.l.b16 %v785
        %v1036 = vunpack.c.l.b16 %v788
        %v1037 = vunpack.c.l.b16 %v792
        %v1038 = vunpack.c.l.b16 %v795
        %v1039 = vunpack.c.l.b16 %v799
        %v1040 = vunpack.c.l.b16 %v802
        %v1041 = vunpack.c.l.b16 %v806
        %v1042 = vunpack.c.l.b16 %v809
        %v1043 = vunpack.c.l.b16 %v813
        %v1044 = vunpack.c.l.b16 %v816
        %v1045 = vpack.c.b16 %v1014, %v1013
        %v1046 = vpack.c.b16 %v1016, %v1015
        %v1047 = vpack.c.b16 %v1018, %v1017
        %v1048 = vpack.c.b16 %v1020, %v1019
        %v1049 = vpack.c.b16 %v1022, %v1021
        %v1050 = vpack.c.b16 %v1024, %v1023
        %v1051 = vpack.c.b16 %v1026, %v1025
        %v1052 = vpack.c.b16 %v1028, %v1027
        %v1053 = vpack.c.b16 %v1030, %v1029
        %v1054 = vpack.c.b16 %v1032, %v1031
        %v1055 = vpack.c.b16 %v1034, %v1033
        %v1056 = vpack.c.b16 %v1036, %v1035
        %v1057 = vpack.c.b16 %v1038, %v1037
        %v1058 = vpack.c.b16 %v1040, %v1039
        %v1059 = vpack.c.b16 %v1042, %v1041
        %v1060 = vpack.c.b16 %v1044, %v1043
        %1061 = vrot.lane.b32.xlu0 %v1045, 8
        %v1062 = vpop.permute.xlu0 %1061
        %1063 = vrot.lane.b32.xlu0 %v1046, 8
        %v1064 = vpop.permute.xlu0 %1063
        %1065 = vrot.lane.b32.xlu0 %v1047, 8
        %v1066 = vpop.permute.xlu0 %1065
        %1067 = vrot.lane.b32.xlu0 %v1048, 8
        %v1068 = vpop.permute.xlu0 %1067
        %1069 = vrot.lane.b32.xlu0 %v1049, 8
        %v1070 = vpop.permute.xlu0 %1069
        %1071 = vrot.lane.b32.xlu0 %v1050, 8
        %v1072 = vpop.permute.xlu0 %1071
        %1073 = vrot.lane.b32.xlu0 %v1051, 8
        %v1074 = vpop.permute.xlu0 %1073
        %1075 = vrot.lane.b32.xlu0 %v1052, 8
        %v1076 = vpop.permute.xlu0 %1075
        %1077 = vrot.lane.b32.xlu0 %v1053, 8
        %v1078 = vpop.permute.xlu0 %1077
        %1079 = vrot.lane.b32.xlu0 %v1054, 8
        %v1080 = vpop.permute.xlu0 %1079
        %1081 = vrot.lane.b32.xlu0 %v1055, 8
        %v1082 = vpop.permute.xlu0 %1081
        %1083 = vrot.lane.b32.xlu0 %v1056, 8
        %v1084 = vpop.permute.xlu0 %1083
        %1085 = vrot.lane.b32.xlu0 %v1057, 8
        %v1086 = vpop.permute.xlu0 %1085
        %1087 = vrot.lane.b32.xlu0 %v1058, 8
        %v1088 = vpop.permute.xlu0 %1087
        %1089 = vrot.lane.b32.xlu0 %v1059, 8
        %v1090 = vpop.permute.xlu0 %1089
        %1091 = vrot.lane.b32.xlu0 %v1060, 8
        %v1092 = vpop.permute.xlu0 %1091
        %v1093 = vunpack.c.l.b16 %v261
        %v1094 = vunpack.c.l.b16 %v262
        %v1095 = vpack.c.b16 %v1094, %v1093
        %1096 = vrot.lane.b32.xlu0 %v918, 12
        %v1097 = vpop.permute.xlu0 %1096
        %1098 = vrot.lane.b32.xlu0 %v919, 12
        %v1099 = vpop.permute.xlu0 %1098
        %1100 = vrot.lane.b32.xlu0 %v920, 12
        %v1101 = vpop.permute.xlu0 %1100
        %1102 = vrot.lane.b32.xlu0 %v921, 12
        %v1103 = vpop.permute.xlu0 %1102
        %1104 = vrot.lane.b32.xlu0 %v922, 12
        %v1105 = vpop.permute.xlu0 %1104
        %1106 = vrot.lane.b32.xlu0 %v923, 12
        %v1107 = vpop.permute.xlu0 %1106
        %1108 = vrot.lane.b32.xlu0 %v924, 12
        %v1109 = vpop.permute.xlu0 %1108
        %1110 = vrot.lane.b32.xlu0 %v925, 12
        %v1111 = vpop.permute.xlu0 %1110
        %1112 = vrot.lane.b32.xlu0 %v926, 12
        %v1113 = vpop.permute.xlu0 %1112
        %1114 = vrot.lane.b32.xlu0 %v927, 12
        %v1115 = vpop.permute.xlu0 %1114
        %1116 = vrot.lane.b32.xlu0 %v928, 12
        %v1117 = vpop.permute.xlu0 %1116
        %1118 = vrot.lane.b32.xlu0 %v929, 12
        %v1119 = vpop.permute.xlu0 %1118
        %1120 = vrot.lane.b32.xlu0 %v930, 12
        %v1121 = vpop.permute.xlu0 %1120
        %1122 = vrot.lane.b32.xlu0 %v931, 12
        %v1123 = vpop.permute.xlu0 %1122
        %1124 = vrot.lane.b32.xlu0 %v932, 12
        %v1125 = vpop.permute.xlu0 %1124
        %1126 = vrot.lane.b32.xlu0 %v1095, 12
        %v1127 = vpop.permute.xlu0 %1126
        %v1128 = vunpack.c.l.b16 %v830
        %v1129 = vunpack.c.l.b16 %v840
        %v1130 = vpack.c.b16 %v1129, %v1128
        %1131 = vrot.lane.b32.xlu0 %v966, 16
        %v1132 = vpop.permute.xlu0 %1131
        %1133 = vrot.lane.b32.xlu0 %v967, 16
        %v1134 = vpop.permute.xlu0 %1133
        %1135 = vrot.lane.b32.xlu0 %v968, 16
        %v1136 = vpop.permute.xlu0 %1135
        %1137 = vrot.lane.b32.xlu0 %v969, 16
        %v1138 = vpop.permute.xlu0 %1137
        %1139 = vrot.lane.b32.xlu0 %v970, 16
        %v1140 = vpop.permute.xlu0 %1139
        %1141 = vrot.lane.b32.xlu0 %v971, 16
        %v1142 = vpop.permute.xlu0 %1141
        %1143 = vrot.lane.b32.xlu0 %v972, 16
        %v1144 = vpop.permute.xlu0 %1143
        %1145 = vrot.lane.b32.xlu0 %v973, 16
        %v1146 = vpop.permute.xlu0 %1145
        %1147 = vrot.lane.b32.xlu0 %v974, 16
        %v1148 = vpop.permute.xlu0 %1147
        %1149 = vrot.lane.b32.xlu0 %v975, 16
        %v1150 = vpop.permute.xlu0 %1149
        %1151 = vrot.lane.b32.xlu0 %v976, 16
        %v1152 = vpop.permute.xlu0 %1151
        %1153 = vrot.lane.b32.xlu0 %v977, 16
        %v1154 = vpop.permute.xlu0 %1153
        %1155 = vrot.lane.b32.xlu0 %v978, 16
        %v1156 = vpop.permute.xlu0 %1155
        %1157 = vrot.lane.b32.xlu0 %v979, 16
        %v1158 = vpop.permute.xlu0 %1157
        %1159 = vrot.lane.b32.xlu0 %v980, 16
        %v1160 = vpop.permute.xlu0 %1159
        %1161 = vrot.lane.b32.xlu0 %v1130, 16
        %v1162 = vpop.permute.xlu0 %1161
        %v1163 = vunpack.c.l.b16 %v847
        %v1164 = vunpack.c.l.b16 %v850
        %v1165 = vpack.c.b16 %v1164, %v1163
        %1166 = vrot.lane.b32.xlu0 %v1046, 20
        %v1167 = vpop.permute.xlu0 %1166
        %1168 = vrot.lane.b32.xlu0 %v1047, 20
        %v1169 = vpop.permute.xlu0 %1168
        %1170 = vrot.lane.b32.xlu0 %v1048, 20
        %v1171 = vpop.permute.xlu0 %1170
        %1172 = vrot.lane.b32.xlu0 %v1049, 20
        %v1173 = vpop.permute.xlu0 %1172
        %1174 = vrot.lane.b32.xlu0 %v1050, 20
        %v1175 = vpop.permute.xlu0 %1174
        %1176 = vrot.lane.b32.xlu0 %v1051, 20
        %v1177 = vpop.permute.xlu0 %1176
        %1178 = vrot.lane.b32.xlu0 %v1052, 20
        %v1179 = vpop.permute.xlu0 %1178
        %1180 = vrot.lane.b32.xlu0 %v1053, 20
        %v1181 = vpop.permute.xlu0 %1180
        %1182 = vrot.lane.b32.xlu0 %v1054, 20
        %v1183 = vpop.permute.xlu0 %1182
        %1184 = vrot.lane.b32.xlu0 %v1055, 20
        %v1185 = vpop.permute.xlu0 %1184
        %1186 = vrot.lane.b32.xlu0 %v1056, 20
        %v1187 = vpop.permute.xlu0 %1186
        %1188 = vrot.lane.b32.xlu0 %v1057, 20
        %v1189 = vpop.permute.xlu0 %1188
        %1190 = vrot.lane.b32.xlu0 %v1058, 20
        %v1191 = vpop.permute.xlu0 %1190
        %1192 = vrot.lane.b32.xlu0 %v1059, 20
        %v1193 = vpop.permute.xlu0 %1192
        %1194 = vrot.lane.b32.xlu0 %v1060, 20
        %v1195 = vpop.permute.xlu0 %1194
        %1196 = vrot.lane.b32.xlu0 %v1165, 20
        %v1197 = vpop.permute.xlu0 %1196
        %v1198 = vunpack.c.l.b16 %v264
        %v1199 = vunpack.c.l.b16 %v265
        %v1200 = vpack.c.b16 %v1199, %v1198
        %1201 = vrot.lane.b32.xlu0 %v919, 24
        %v1202 = vpop.permute.xlu0 %1201
        %1203 = vrot.lane.b32.xlu0 %v920, 24
        %v1204 = vpop.permute.xlu0 %1203
        %1205 = vrot.lane.b32.xlu0 %v921, 24
        %v1206 = vpop.permute.xlu0 %1205
        %1207 = vrot.lane.b32.xlu0 %v922, 24
        %v1208 = vpop.permute.xlu0 %1207
        %1209 = vrot.lane.b32.xlu0 %v923, 24
        %v1210 = vpop.permute.xlu0 %1209
        %1211 = vrot.lane.b32.xlu0 %v924, 24
        %v1212 = vpop.permute.xlu0 %1211
        %1213 = vrot.lane.b32.xlu0 %v925, 24
        %v1214 = vpop.permute.xlu0 %1213
        %1215 = vrot.lane.b32.xlu0 %v926, 24
        %v1216 = vpop.permute.xlu0 %1215
        %1217 = vrot.lane.b32.xlu0 %v927, 24
        %v1218 = vpop.permute.xlu0 %1217
        %1219 = vrot.lane.b32.xlu0 %v928, 24
        %v1220 = vpop.permute.xlu0 %1219
        %1221 = vrot.lane.b32.xlu0 %v929, 24
        %v1222 = vpop.permute.xlu0 %1221
        %1223 = vrot.lane.b32.xlu0 %v930, 24
        %v1224 = vpop.permute.xlu0 %1223
        %1225 = vrot.lane.b32.xlu0 %v931, 24
        %v1226 = vpop.permute.xlu0 %1225
        %1227 = vrot.lane.b32.xlu0 %v932, 24
        %v1228 = vpop.permute.xlu0 %1227
        %1229 = vrot.lane.b32.xlu0 %v1095, 24
        %v1230 = vpop.permute.xlu0 %1229
        %1231 = vrot.lane.b32.xlu0 %v1200, 24
        %v1232 = vpop.permute.xlu0 %1231
        %v1233 = vunpack.c.l.b16 %v864
        %v1234 = vunpack.c.l.b16 %v874
        %v1235 = vpack.c.b16 %v1234, %v1233
        %1236 = vrot.lane.b32.xlu0 %v967, 28
        %v1237 = vpop.permute.xlu0 %1236
        %1238 = vrot.lane.b32.xlu0 %v968, 28
        %v1239 = vpop.permute.xlu0 %1238
        %1240 = vrot.lane.b32.xlu0 %v969, 28
        %v1241 = vpop.permute.xlu0 %1240
        %1242 = vrot.lane.b32.xlu0 %v970, 28
        %v1243 = vpop.permute.xlu0 %1242
        %1244 = vrot.lane.b32.xlu0 %v971, 28
        %v1245 = vpop.permute.xlu0 %1244
        %1246 = vrot.lane.b32.xlu0 %v972, 28
        %v1247 = vpop.permute.xlu0 %1246
        %1248 = vrot.lane.b32.xlu0 %v973, 28
        %v1249 = vpop.permute.xlu0 %1248
        %1250 = vrot.lane.b32.xlu0 %v974, 28
        %v1251 = vpop.permute.xlu0 %1250
        %1252 = vrot.lane.b32.xlu0 %v975, 28
        %v1253 = vpop.permute.xlu0 %1252
        %1254 = vrot.lane.b32.xlu0 %v976, 28
        %v1255 = vpop.permute.xlu0 %1254
        %1256 = vrot.lane.b32.xlu0 %v977, 28
        %v1257 = vpop.permute.xlu0 %1256
        %1258 = vrot.lane.b32.xlu0 %v978, 28
        %v1259 = vpop.permute.xlu0 %1258
        %1260 = vrot.lane.b32.xlu0 %v979, 28
        %v1261 = vpop.permute.xlu0 %1260
        %1262 = vrot.lane.b32.xlu0 %v980, 28
        %v1263 = vpop.permute.xlu0 %1262
        %1264 = vrot.lane.b32.xlu0 %v1130, 28
        %v1265 = vpop.permute.xlu0 %1264
        %1266 = vrot.lane.b32.xlu0 %v1235, 28
        %v1267 = vpop.permute.xlu0 %1266
        %v1268 = vunpack.c.l.b16 %v881
        %v1269 = vunpack.c.l.b16 %v884
        %v1270 = vpack.c.b16 %v1269, %v1268
        %1271 = vrot.lane.b32.xlu0 %v1047, 32
        %v1272 = vpop.permute.xlu0 %1271
        %1273 = vrot.lane.b32.xlu0 %v1048, 32
        %v1274 = vpop.permute.xlu0 %1273
        %1275 = vrot.lane.b32.xlu0 %v1049, 32
        %v1276 = vpop.permute.xlu0 %1275
        %1277 = vrot.lane.b32.xlu0 %v1050, 32
        %v1278 = vpop.permute.xlu0 %1277
        %1279 = vrot.lane.b32.xlu0 %v1051, 32
        %v1280 = vpop.permute.xlu0 %1279
        %1281 = vrot.lane.b32.xlu0 %v1052, 32
        %v1282 = vpop.permute.xlu0 %1281
        %1283 = vrot.lane.b32.xlu0 %v1053, 32
        %v1284 = vpop.permute.xlu0 %1283
        %1285 = vrot.lane.b32.xlu0 %v1054, 32
        %v1286 = vpop.permute.xlu0 %1285
        %1287 = vrot.lane.b32.xlu0 %v1055, 32
        %v1288 = vpop.permute.xlu0 %1287
        %1289 = vrot.lane.b32.xlu0 %v1056, 32
        %v1290 = vpop.permute.xlu0 %1289
        %1291 = vrot.lane.b32.xlu0 %v1057, 32
        %v1292 = vpop.permute.xlu0 %1291
        %1293 = vrot.lane.b32.xlu0 %v1058, 32
        %v1294 = vpop.permute.xlu0 %1293
        %1295 = vrot.lane.b32.xlu0 %v1059, 32
        %v1296 = vpop.permute.xlu0 %1295
        %1297 = vrot.lane.b32.xlu0 %v1060, 32
        %v1298 = vpop.permute.xlu0 %1297
        %1299 = vrot.lane.b32.xlu0 %v1165, 32
        %v1300 = vpop.permute.xlu0 %1299
        %1301 = vrot.lane.b32.xlu0 %v1270, 32
        %v1302 = vpop.permute.xlu0 %1301
        %vm1303 = vcmask 31744
        %v1306 = vsel %vm1303, %v917, %v982
        %v1309 = vsel %vm1303, %v918, %v984
        %v1312 = vsel %vm1303, %v919, %v986
        %v1315 = vsel %vm1303, %v920, %v988
        %v1318 = vsel %vm1303, %v921, %v990
        %v1321 = vsel %vm1303, %v922, %v992
        %v1324 = vsel %vm1303, %v923, %v994
        %v1327 = vsel %vm1303, %v924, %v996
        %v1330 = vsel %vm1303, %v925, %v998
        %v1333 = vsel %vm1303, %v926, %v1000
        %v1336 = vsel %vm1303, %v927, %v1002
        %v1339 = vsel %vm1303, %v928, %v1004
        %v1342 = vsel %vm1303, %v929, %v1006
        %v1345 = vsel %vm1303, %v930, %v1008
        %v1348 = vsel %vm1303, %v931, %v1010
        %v1351 = vsel %vm1303, %v932, %v1012
        %vm1352 = vcmask 64512
        %v1354 = vsel %vm1352, %v1306, %v1062
        %v1356 = vsel %vm1352, %v1309, %v1064
        %v1358 = vsel %vm1352, %v1312, %v1066
        %v1360 = vsel %vm1352, %v1315, %v1068
        %v1362 = vsel %vm1352, %v1318, %v1070
        %v1364 = vsel %vm1352, %v1321, %v1072
        %v1366 = vsel %vm1352, %v1324, %v1074
        %v1368 = vsel %vm1352, %v1327, %v1076
        %v1370 = vsel %vm1352, %v1330, %v1078
        %v1372 = vsel %vm1352, %v1333, %v1080
        %v1374 = vsel %vm1352, %v1336, %v1082
        %v1376 = vsel %vm1352, %v1339, %v1084
        %v1378 = vsel %vm1352, %v1342, %v1086
        %v1380 = vsel %vm1352, %v1345, %v1088
        %v1382 = vsel %vm1352, %v1348, %v1090
        %v1384 = vsel %vm1352, %v1351, %v1092
        %vm1385 = vcmask 97280
        %v1387 = vsel %vm1385, %v1354, %v1097
        %v1389 = vsel %vm1385, %v1356, %v1099
        %v1391 = vsel %vm1385, %v1358, %v1101
        %v1393 = vsel %vm1385, %v1360, %v1103
        %v1395 = vsel %vm1385, %v1362, %v1105
        %v1397 = vsel %vm1385, %v1364, %v1107
        %v1399 = vsel %vm1385, %v1366, %v1109
        %v1401 = vsel %vm1385, %v1368, %v1111
        %v1403 = vsel %vm1385, %v1370, %v1113
        %v1405 = vsel %vm1385, %v1372, %v1115
        %v1407 = vsel %vm1385, %v1374, %v1117
        %v1409 = vsel %vm1385, %v1376, %v1119
        %v1411 = vsel %vm1385, %v1378, %v1121
        %v1413 = vsel %vm1385, %v1380, %v1123
        %v1415 = vsel %vm1385, %v1382, %v1125
        %v1417 = vsel %vm1385, %v1384, %v1127
        %vm1418 = vcmask 130048
        %v1420 = vsel %vm1418, %v1387, %v1132
        %v1422 = vsel %vm1418, %v1389, %v1134
        %v1424 = vsel %vm1418, %v1391, %v1136
        %v1426 = vsel %vm1418, %v1393, %v1138
        %v1428 = vsel %vm1418, %v1395, %v1140
        %v1430 = vsel %vm1418, %v1397, %v1142
        %v1432 = vsel %vm1418, %v1399, %v1144
        %v1434 = vsel %vm1418, %v1401, %v1146
        %v1436 = vsel %vm1418, %v1403, %v1148
        %v1438 = vsel %vm1418, %v1405, %v1150
        %v1440 = vsel %vm1418, %v1407, %v1152
        %v1442 = vsel %vm1418, %v1409, %v1154
        %v1444 = vsel %vm1418, %v1411, %v1156
        %v1446 = vsel %vm1418, %v1413, %v1158
        %v1448 = vsel %vm1418, %v1415, %v1160
        %v1450 = vsel %vm1418, %v1417, %v1162
        %vm1451 = vcmask 162816
        %v1453 = vsel %vm1451, %v1420, %v1167
        %v1455 = vsel %vm1451, %v1422, %v1169
        %v1457 = vsel %vm1451, %v1424, %v1171
        %v1459 = vsel %vm1451, %v1426, %v1173
        %v1461 = vsel %vm1451, %v1428, %v1175
        %v1463 = vsel %vm1451, %v1430, %v1177
        %v1465 = vsel %vm1451, %v1432, %v1179
        %v1467 = vsel %vm1451, %v1434, %v1181
        %v1469 = vsel %vm1451, %v1436, %v1183
        %v1471 = vsel %vm1451, %v1438, %v1185
        %v1473 = vsel %vm1451, %v1440, %v1187
        %v1475 = vsel %vm1451, %v1442, %v1189
        %v1477 = vsel %vm1451, %v1444, %v1191
        %v1479 = vsel %vm1451, %v1446, %v1193
        %v1481 = vsel %vm1451, %v1448, %v1195
        %v1483 = vsel %vm1451, %v1450, %v1197
        %vm1484 = vcmask 195584
        %v1486 = vsel %vm1484, %v1453, %v1202
        %v1488 = vsel %vm1484, %v1455, %v1204
        %v1490 = vsel %vm1484, %v1457, %v1206
        %v1492 = vsel %vm1484, %v1459, %v1208
        %v1494 = vsel %vm1484, %v1461, %v1210
        %v1496 = vsel %vm1484, %v1463, %v1212
        %v1498 = vsel %vm1484, %v1465, %v1214
        %v1500 = vsel %vm1484, %v1467, %v1216
        %v1502 = vsel %vm1484, %v1469, %v1218
        %v1504 = vsel %vm1484, %v1471, %v1220
        %v1506 = vsel %vm1484, %v1473, %v1222
        %v1508 = vsel %vm1484, %v1475, %v1224
        %v1510 = vsel %vm1484, %v1477, %v1226
        %v1512 = vsel %vm1484, %v1479, %v1228
        %v1514 = vsel %vm1484, %v1481, %v1230
        %v1516 = vsel %vm1484, %v1483, %v1232
        %vm1517 = vcmask 228352
        %v1519 = vsel %vm1517, %v1486, %v1237
        %v1521 = vsel %vm1517, %v1488, %v1239
        %v1523 = vsel %vm1517, %v1490, %v1241
        %v1525 = vsel %vm1517, %v1492, %v1243
        %v1527 = vsel %vm1517, %v1494, %v1245
        %v1529 = vsel %vm1517, %v1496, %v1247
        %v1531 = vsel %vm1517, %v1498, %v1249
        %v1533 = vsel %vm1517, %v1500, %v1251
        %v1535 = vsel %vm1517, %v1502, %v1253
        %v1537 = vsel %vm1517, %v1504, %v1255
        %v1539 = vsel %vm1517, %v1506, %v1257
        %v1541 = vsel %vm1517, %v1508, %v1259
        %v1543 = vsel %vm1517, %v1510, %v1261
        %v1545 = vsel %vm1517, %v1512, %v1263
        %v1547 = vsel %vm1517, %v1514, %v1265
        %v1549 = vsel %vm1517, %v1516, %v1267
        %vm1550 = vcmask 261120
        %v1552 = vsel %vm1550, %v1519, %v1272
        %v1554 = vsel %vm1550, %v1521, %v1274
        %v1556 = vsel %vm1550, %v1523, %v1276
        %v1558 = vsel %vm1550, %v1525, %v1278
        %v1560 = vsel %vm1550, %v1527, %v1280
        %v1562 = vsel %vm1550, %v1529, %v1282
        %v1564 = vsel %vm1550, %v1531, %v1284
        %v1566 = vsel %vm1550, %v1533, %v1286
        %v1568 = vsel %vm1550, %v1535, %v1288
        %v1570 = vsel %vm1550, %v1537, %v1290
        %v1572 = vsel %vm1550, %v1539, %v1292
        %v1574 = vsel %vm1550, %v1541, %v1294
        %v1576 = vsel %vm1550, %v1543, %v1296
        %v1578 = vsel %vm1550, %v1545, %v1298
        %v1580 = vsel %vm1550, %v1547, %v1300
        %v1582 = vsel %vm1550, %v1549, %v1302
        %v1583 = vld [vmem:[%s1] sm:$0xf]
        %v1584 = vld [vmem:[%s1 + $0x4] sm:$0xf]
        %v1585 = vld [vmem:[%s1 + $0x8] sm:$0xf]
        %v1586 = vld [vmem:[%s1 + $0xc] sm:$0xf]
        %v1587 = vld [vmem:[%s1 + $0x10] sm:$0x3]
        %v1593 = vunpack.c.l.b16 %v1583
        %v1594 = vunpack.c.l.b16 %v1584
        %v1595 = vunpack.c.l.b16 %v1585
        %v1596 = vunpack.c.l.b16 %v1586
        %v1597 = vunpack.c.l.b16 %v1587
        %v1598 = vpack.c.b16 %v1594, %v1593
        %v1599 = vpack.c.b16 %v1596, %v1595
        %v1600 = vpack.c.b16 %v1597, %v1597
        %vm1603 = vcmask 293888
        %v1604 = vsel %vm1603, %v1552, 0
        %v1606 = vsel %vm1603, %v1554, 0
        %v1608 = vsel %vm1603, %v1556, 0
        %v1610 = vsel %vm1603, %v1558, 0
        %v1612 = vsel %vm1603, %v1560, 0
        %v1614 = vsel %vm1603, %v1562, 0
        %v1616 = vsel %vm1603, %v1564, 0
        %v1618 = vsel %vm1603, %v1566, 0
        %v1620 = vsel %vm1603, %v1568, 0
        %v1622 = vsel %vm1603, %v1570, 0
        %v1624 = vsel %vm1603, %v1572, 0
        %v1626 = vsel %vm1603, %v1574, 0
        %v1628 = vsel %vm1603, %v1576, 0
        %v1630 = vsel %vm1603, %v1578, 0
        %v1632 = vsel %vm1603, %v1580, 0
        %v1634 = vsel %vm1603, %v1582, 0
        %vm1636 = vcmask 1041408
        %v1638 = vsel %vm1636, %v1600, 0
        %1640 = vmatpush.bf16.msra.mxu0 0
        %1641 = vmatpush.bf16.msra.mxu0 0
        %1642 = vmatpush.bf16.msra.mxu0 0
        %1643 = vmatpush.bf16.msra.mxu0 0
        %1644 = vmatpush.bf16.msra.mxu0 0
        %1645 = vmatpush.bf16.msra.mxu0 %v1638
        %1646 = vmatpush.bf16.msra.mxu0 %v1599
        %1647 = vmatpush.bf16.msra.mxu0 %v1598
        %1648 = vmatmul.bf16.gmra.mxu0 %v1604
        %v1649 = vpop.f32.mrf.mxu0
        %v1650 = vadd.f32 0.0, %v1649
        %v1651 = vpop.f32.mrf.mxu0
        %v1652 = vadd.f32 0.0, %v1651
        %1653 = vmatmul.bf16.gmra.mxu0 %v1606
        %v1654 = vpop.f32.mrf.mxu0
        %v1655 = vadd.f32 0.0, %v1654
        %v1656 = vpop.f32.mrf.mxu0
        %v1657 = vadd.f32 0.0, %v1656
        %1658 = vmatmul.bf16.gmra.mxu0 %v1608
        %v1659 = vpop.f32.mrf.mxu0
        %v1660 = vadd.f32 0.0, %v1659
        %v1661 = vpop.f32.mrf.mxu0
        %v1662 = vadd.f32 0.0, %v1661
        %1663 = vmatmul.bf16.gmra.mxu0 %v1610
        %v1664 = vpop.f32.mrf.mxu0
        %v1665 = vadd.f32 0.0, %v1664
        %v1666 = vpop.f32.mrf.mxu0
        %v1667 = vadd.f32 0.0, %v1666
        %1668 = vmatmul.bf16.gmra.mxu0 %v1612
        %v1669 = vpop.f32.mrf.mxu0
        %v1670 = vadd.f32 0.0, %v1669
        %v1671 = vpop.f32.mrf.mxu0
        %v1672 = vadd.f32 0.0, %v1671
        %1673 = vmatmul.bf16.gmra.mxu0 %v1614
        %v1674 = vpop.f32.mrf.mxu0
        %v1675 = vadd.f32 0.0, %v1674
        %v1676 = vpop.f32.mrf.mxu0
        %v1677 = vadd.f32 0.0, %v1676
        %1678 = vmatmul.bf16.gmra.mxu0 %v1616
        %v1679 = vpop.f32.mrf.mxu0
        %v1680 = vadd.f32 0.0, %v1679
        %v1681 = vpop.f32.mrf.mxu0
        %v1682 = vadd.f32 0.0, %v1681
        %1683 = vmatmul.bf16.gmra.mxu0 %v1618
        %v1684 = vpop.f32.mrf.mxu0
        %v1685 = vadd.f32 0.0, %v1684
        %v1686 = vpop.f32.mrf.mxu0
        %v1687 = vadd.f32 0.0, %v1686
        %1688 = vmatmul.bf16.gmra.mxu0 %v1620
        %v1689 = vpop.f32.mrf.mxu0
        %v1690 = vadd.f32 0.0, %v1689
        %v1691 = vpop.f32.mrf.mxu0
        %v1692 = vadd.f32 0.0, %v1691
        %1693 = vmatmul.bf16.gmra.mxu0 %v1622
        %v1694 = vpop.f32.mrf.mxu0
        %v1695 = vadd.f32 0.0, %v1694
        %v1696 = vpop.f32.mrf.mxu0
        %v1697 = vadd.f32 0.0, %v1696
        %1698 = vmatmul.bf16.gmra.mxu0 %v1624
        %v1699 = vpop.f32.mrf.mxu0
        %v1700 = vadd.f32 0.0, %v1699
        %v1701 = vpop.f32.mrf.mxu0
        %v1702 = vadd.f32 0.0, %v1701
        %1703 = vmatmul.bf16.gmra.mxu0 %v1626
        %v1704 = vpop.f32.mrf.mxu0
        %v1705 = vadd.f32 0.0, %v1704
        %v1706 = vpop.f32.mrf.mxu0
        %v1707 = vadd.f32 0.0, %v1706
        %1708 = vmatmul.bf16.gmra.mxu0 %v1628
        %v1709 = vpop.f32.mrf.mxu0
        %v1710 = vadd.f32 0.0, %v1709
        %v1711 = vpop.f32.mrf.mxu0
        %v1712 = vadd.f32 0.0, %v1711
        %1713 = vmatmul.bf16.gmra.mxu0 %v1630
        %v1714 = vpop.f32.mrf.mxu0
        %v1715 = vadd.f32 0.0, %v1714
        %v1716 = vpop.f32.mrf.mxu0
        %v1717 = vadd.f32 0.0, %v1716
        %1718 = vmatmul.bf16.gmra.mxu0 %v1632
        %v1719 = vpop.f32.mrf.mxu0
        %v1720 = vadd.f32 0.0, %v1719
        %v1721 = vpop.f32.mrf.mxu0
        %v1722 = vadd.f32 0.0, %v1721
        %1723 = vmatmul.bf16.gmra.mxu0 %v1634
        %v1724 = vpop.f32.mrf.mxu0
        %v1725 = vadd.f32 0.0, %v1724
        %v1726 = vpop.f32.mrf.mxu0
        %v1727 = vadd.f32 0.0, %v1726
        %1728 = vdwg.mxu0
        %1729 = vst [vmem:[%s194] sm:$0xff] %v1650
        %1730 = vst [vmem:[%s194 + $0x8] sm:$0xff] %v1652
        %1731 = vst [vmem:[%s194 + $0x10] sm:$0xff] %v1655
        %1732 = vst [vmem:[%s194 + $0x18] sm:$0xff] %v1657
        %1733 = vst [vmem:[%s194 + $0x20] sm:$0xff] %v1660
        %1734 = vst [vmem:[%s194 + $0x28] sm:$0xff] %v1662
        %1735 = vst [vmem:[%s194 + $0x30] sm:$0xff] %v1665
        %1736 = vst [vmem:[%s194 + $0x38] sm:$0xff] %v1667
        %1737 = vst [vmem:[%s194 + $0x40] sm:$0xff] %v1670
        %1738 = vst [vmem:[%s194 + $0x48] sm:$0xff] %v1672
        %1739 = vst [vmem:[%s194 + $0x50] sm:$0xff] %v1675
        %1740 = vst [vmem:[%s194 + $0x58] sm:$0xff] %v1677
        %1741 = vst [vmem:[%s194 + $0x60] sm:$0xff] %v1680
        %1742 = vst [vmem:[%s194 + $0x68] sm:$0xff] %v1682
        %1743 = vst [vmem:[%s194 + $0x70] sm:$0xff] %v1685
        %1744 = vst [vmem:[%s194 + $0x78] sm:$0xff] %v1687
        %1745 = vst [vmem:[%s194 + $0x80] sm:$0xff] %v1690
        %1746 = vst [vmem:[%s194 + $0x88] sm:$0xff] %v1692
        %1747 = vst [vmem:[%s194 + $0x90] sm:$0xff] %v1695
        %1748 = vst [vmem:[%s194 + $0x98] sm:$0xff] %v1697
        %1749 = vst [vmem:[%s194 + $0xa0] sm:$0xff] %v1700
        %1750 = vst [vmem:[%s194 + $0xa8] sm:$0xff] %v1702
        %1751 = vst [vmem:[%s194 + $0xb0] sm:$0xff] %v1705
        %1752 = vst [vmem:[%s194 + $0xb8] sm:$0xff] %v1707
        %1753 = vst [vmem:[%s194 + $0xc0] sm:$0xff] %v1710
        %1754 = vst [vmem:[%s194 + $0xc8] sm:$0xff] %v1712
        %1755 = vst [vmem:[%s194 + $0xd0] sm:$0xff] %v1715
        %1756 = vst [vmem:[%s194 + $0xd8] sm:$0xff] %v1717
        %1757 = vst [vmem:[%s194 + $0xe0] sm:$0xff] %v1720
        %1758 = vst [vmem:[%s194 + $0xe8] sm:$0xff] %v1722
        %1759 = vst [vmem:[%s194 + $0xf0] sm:$0xff] %v1725
        %1760 = vst [vmem:[%s194 + $0xf8] sm:$0xff] %v1727
        %v1761 = vadd.f32 %v1650, %v1652
        %v1762 = vadd.f32 %v1761, %v1655
        %v1763 = vadd.f32 %v1762, %v1657
        %v1764 = vadd.f32 %v1763, %v1660
        %v1765 = vadd.f32 %v1764, %v1662
        %v1766 = vadd.f32 %v1765, %v1665
        %v1767 = vadd.f32 %v1766, %v1667
        %v1768 = vadd.f32 %v1767, %v1670
        %v1769 = vadd.f32 %v1768, %v1672
        %v1770 = vadd.f32 %v1769, %v1675
        %v1771 = vadd.f32 %v1770, %v1677
        %v1772 = vadd.f32 %v1771, %v1680
        %v1773 = vadd.f32 %v1772, %v1682
        %v1774 = vadd.f32 %v1773, %v1685
        %v1775 = vadd.f32 %v1774, %v1687
        %v1776 = vadd.f32 %v1775, %v1690
        %v1777 = vadd.f32 %v1776, %v1692
        %v1778 = vadd.f32 %v1777, %v1695
        %v1779 = vadd.f32 %v1778, %v1697
        %v1780 = vadd.f32 %v1779, %v1700
        %v1781 = vadd.f32 %v1780, %v1702
        %v1782 = vadd.f32 %v1781, %v1705
        %v1783 = vadd.f32 %v1782, %v1707
        %v1784 = vadd.f32 %v1783, %v1710
        %v1785 = vadd.f32 %v1784, %v1712
        %v1786 = vadd.f32 %v1785, %v1715
        %v1787 = vadd.f32 %v1786, %v1717
        %v1788 = vadd.f32 %v1787, %v1720
        %v1789 = vadd.f32 %v1788, %v1722
        %v1790 = vadd.f32 %v1789, %v1725
        %v1791 = vadd.f32 %v1790, %v1727
        %v1792 = vrot.slane %v1791, 4
        %v1793 = vadd.f32 %v1791, %v1792
        %v1794 = vrot.slane %v1793, 2
        %v1795 = vadd.f32 %v1793, %v1794
        %v1796 = vrot.slane %v1795, 1
        %v1797 = vadd.f32 %v1795, %v1796
        %1798 = vst [vmem:[%s200] sm:$0x1] %v1797
        %v1799 = vmul.f32 %v1650, %v1650
        %v1800 = vmul.f32 %v1652, %v1652
        %v1801 = vmul.f32 %v1655, %v1655
        %v1802 = vmul.f32 %v1657, %v1657
        %v1803 = vmul.f32 %v1660, %v1660
        %v1804 = vmul.f32 %v1662, %v1662
        %v1805 = vmul.f32 %v1665, %v1665
        %v1806 = vmul.f32 %v1667, %v1667
        %v1807 = vmul.f32 %v1670, %v1670
        %v1808 = vmul.f32 %v1672, %v1672
        %v1809 = vmul.f32 %v1675, %v1675
        %v1810 = vmul.f32 %v1677, %v1677
        %v1811 = vmul.f32 %v1680, %v1680
        %v1812 = vmul.f32 %v1682, %v1682
        %v1813 = vmul.f32 %v1685, %v1685
        %v1814 = vmul.f32 %v1687, %v1687
        %v1815 = vmul.f32 %v1690, %v1690
        %v1816 = vmul.f32 %v1692, %v1692
        %v1817 = vmul.f32 %v1695, %v1695
        %v1818 = vmul.f32 %v1697, %v1697
        %v1819 = vmul.f32 %v1700, %v1700
        %v1820 = vmul.f32 %v1702, %v1702
        %v1821 = vmul.f32 %v1705, %v1705
        %v1822 = vmul.f32 %v1707, %v1707
        %v1823 = vmul.f32 %v1710, %v1710
        %v1824 = vmul.f32 %v1712, %v1712
        %v1825 = vmul.f32 %v1715, %v1715
        %v1826 = vmul.f32 %v1717, %v1717
        %v1827 = vmul.f32 %v1720, %v1720
        %v1828 = vmul.f32 %v1722, %v1722
        %v1829 = vmul.f32 %v1725, %v1725
        %v1830 = vmul.f32 %v1727, %v1727
        %v1831 = vadd.f32 %v1799, %v1800
        %v1832 = vadd.f32 %v1831, %v1801
        %v1833 = vadd.f32 %v1832, %v1802
        %v1834 = vadd.f32 %v1833, %v1803
        %v1835 = vadd.f32 %v1834, %v1804
        %v1836 = vadd.f32 %v1835, %v1805
        %v1837 = vadd.f32 %v1836, %v1806
        %v1838 = vadd.f32 %v1837, %v1807
        %v1839 = vadd.f32 %v1838, %v1808
        %v1840 = vadd.f32 %v1839, %v1809
        %v1841 = vadd.f32 %v1840, %v1810
        %v1842 = vadd.f32 %v1841, %v1811
        %v1843 = vadd.f32 %v1842, %v1812
        %v1844 = vadd.f32 %v1843, %v1813
        %v1845 = vadd.f32 %v1844, %v1814
        %v1846 = vadd.f32 %v1845, %v1815
        %v1847 = vadd.f32 %v1846, %v1816
        %v1848 = vadd.f32 %v1847, %v1817
        %v1849 = vadd.f32 %v1848, %v1818
        %v1850 = vadd.f32 %v1849, %v1819
        %v1851 = vadd.f32 %v1850, %v1820
        %v1852 = vadd.f32 %v1851, %v1821
        %v1853 = vadd.f32 %v1852, %v1822
        %v1854 = vadd.f32 %v1853, %v1823
        %v1855 = vadd.f32 %v1854, %v1824
        %v1856 = vadd.f32 %v1855, %v1825
        %v1857 = vadd.f32 %v1856, %v1826
        %v1858 = vadd.f32 %v1857, %v1827
        %v1859 = vadd.f32 %v1858, %v1828
        %v1860 = vadd.f32 %v1859, %v1829
        %v1861 = vadd.f32 %v1860, %v1830
        %v1862 = vrot.slane %v1861, 4
        %v1863 = vadd.f32 %v1861, %v1862
        %v1864 = vrot.slane %v1863, 2
        %v1865 = vadd.f32 %v1863, %v1864
        %v1866 = vrot.slane %v1865, 1
        %v1867 = vadd.f32 %v1865, %v1866
        %1868 = vst [vmem:[%s206] sm:$0x1] %v1867
        %s1869 = sand.u32 %s77, 1
        %s1870 = scalar_lea.sflag [#allocation3], %s1869
        %s1871 = sand.u32 %s77, 1
        %s1872 = smul.addr %s1871, 256
        %s1873 = scalar_lea.vmem [#allocation2], %s1872
        %s1874 = sand.u32 %s22, 1
        %s1875 = scalar_lea.sflag [#allocation5], %s1874
        %s1876 = sand.u32 %s103, 1
        %s1877 = scalar_lea.vmem [#allocation4], %s1876
        %s1878 = sand.u32 %s22, 1
        %s1879 = scalar_lea.sflag [#allocation5], %s1878
        %s1880 = sand.u32 %s129, 1
        %s1881 = scalar_lea.vmem [#allocation6], %s1880
        // Predicated region
        $region29: #{tpu_custom_call.1} parent=27 // pred_check
          %p1882 = pneg %p87
        $region30: #{tpu_custom_call.1} parent=27 // pred_check_branch
          %1884 = sbr.rel (%p1882) target = $region32
        $region31: #{tpu_custom_call.1} parent=27 // pred_region
          %1886 = vsyncadd %s1870, 0
          %s1887 = smul.addr %s22, 32
          %s1888 = smul.addr %s1887, 8
          %s1889 = scalar_lea.hbm %s2, %s1888
          %s1890 = sshll.u32 %s1873, 4
          %s1891 = int_to_ptr.vmem [resolvable:$true] %s1890
          %s1892 = sshll.u32 %s1889, 4
          %s1893 = int_to_ptr.hbm [resolvable:$true] %s1892
          %1898 = dma.vmem_to_hbm [thread:$0]  %s1891, 4096, %s1893, %s1870, 128, 128, 8
        $region32: #{tpu_custom_call.1} parent=27 // pred_fallthru
          _
        // Predicated region
        $region33: #{tpu_custom_call.1} parent=27 // pred_check
          %p1899 = pneg %p113
        $region34: #{tpu_custom_call.1} parent=27 // pred_check_branch
          %1901 = sbr.rel (%p1899) target = $region36
        $region35: #{tpu_custom_call.1} parent=27 // pred_region
          %1903 = vsyncadd %s1875, 0
          %s1904 = scalar_lea.hbm %s3, %s22
          %s1906 = sshll.u32 %s1877, 4
          %s1907 = int_to_ptr.vmem [resolvable:$true] %s1906
          %s1908 = sshll.u32 %s1904, 4
          %s1909 = int_to_ptr.hbm [resolvable:$true] %s1908
          %1911 = dma.vmem_to_hbm [thread:$0]  %s1907, 16, %s1909, %s1875
        $region36: #{tpu_custom_call.1} parent=27 // pred_fallthru
          _
        // Predicated region
        $region37: #{tpu_custom_call.1} parent=27 // pred_check
          %p1912 = pneg %p139
        $region38: #{tpu_custom_call.1} parent=27 // pred_check_branch
          %1914 = sbr.rel (%p1912) target = $region40
        $region39: #{tpu_custom_call.1} parent=27 // pred_region
          %1916 = vsyncadd %s1879, 0
          %s1917 = scalar_lea.hbm %s4, %s22
          %s1919 = sshll.u32 %s1881, 4
          %s1920 = int_to_ptr.vmem [resolvable:$true] %s1919
          %s1921 = sshll.u32 %s1917, 4
          %s1922 = int_to_ptr.hbm [resolvable:$true] %s1921
          %1924 = dma.vmem_to_hbm [thread:$0]  %s1920, 16, %s1922, %s1879
        $region40: #{tpu_custom_call.1} parent=27 // pred_fallthru
          _
      $region28: #{tpu_custom_call.1} parent=5 // pred_fallthru
        _
      %p1925 = scmp.le.s32.totalorder 2, %s17
      // Predicated region
      $region41: #{tpu_custom_call.1} parent=5 // pred_check
        %p1926 = pneg %p1925
      $region42: #{tpu_custom_call.1} parent=5 // pred_check_branch
        %1928 = sbr.rel (%p1926) target = $region44
      $region43: #{tpu_custom_call.1} parent=5 // pred_region
        %s1929 = ssub.s32 %s17, 2
        // Predicated region
        $region45: #{tpu_custom_call.1} parent=43 // pred_check
          %p1930 = pneg %p93
        $region46: #{tpu_custom_call.1} parent=43 // pred_check_branch
          %1932 = sbr.rel (%p1930) target = $region48
        $region47: #{tpu_custom_call.1} parent=43 // pred_region
          %s1933 = sand.u32 %s78, 1
          %s1934 = scalar_lea.sflag [#allocation3], %s1933
          %s1935 = sand.u32 %s78, 1
          %s1936 = smul.addr %s1935, 256
          %s1937 = scalar_lea.vmem [#allocation2], %s1936
          %1939 = dma.done %s1934, 4096
        $region48: #{tpu_custom_call.1} parent=43 // pred_fallthru
          _
        // Predicated region
        $region49: #{tpu_custom_call.1} parent=43 // pred_check
          %p1940 = pneg %p119
        $region50: #{tpu_custom_call.1} parent=43 // pred_check_branch
          %1942 = sbr.rel (%p1940) target = $region52
        $region51: #{tpu_custom_call.1} parent=43 // pred_region
          %s1943 = sand.u32 %s23, 1
          %s1944 = scalar_lea.sflag [#allocation5], %s1943
          %s1945 = sand.u32 %s104, 1
          %s1946 = scalar_lea.vmem [#allocation4], %s1945
          %1948 = dma.done %s1944, 16
        $region52: #{tpu_custom_call.1} parent=43 // pred_fallthru
          _
        // Predicated region
        $region53: #{tpu_custom_call.1} parent=43 // pred_check
          %p1949 = pneg %p145
        $region54: #{tpu_custom_call.1} parent=43 // pred_check_branch
          %1951 = sbr.rel (%p1949) target = $region56
        $region55: #{tpu_custom_call.1} parent=43 // pred_region
          %s1952 = sand.u32 %s23, 1
          %s1953 = scalar_lea.sflag [#allocation5], %s1952
          %s1954 = sand.u32 %s130, 1
          %s1955 = scalar_lea.vmem [#allocation6], %s1954
          %1957 = dma.done %s1953, 16
        $region56: #{tpu_custom_call.1} parent=43 // pred_fallthru
          _
      $region44: #{tpu_custom_call.1} parent=5 // pred_fallthru
        _
    $region6: #{tpu_custom_call.1} parent=1 // loop_footer
      %s21 = sadd.s32 1, %s17
    $region7: #{tpu_custom_call.1} parent=1 // loop_footer_branch
      %16 = sbr.rel target = $region3
    $region8: #{tpu_custom_call.1} parent=1 // loop_exit
      _
    %1958 = vsyncpa [#allocation3], 1
    %s1959 = scalar_lea.sflag [#allocation3], 1
    %1960 = vsyncpa %s1959, 1
    %1961 = vsyncpa [#allocation5], 1
    %s1962 = scalar_lea.sflag [#allocation5], 1
    %1963 = vsyncpa %s1962, 1

</llo_original>
